<compile_context>
chip_gen: v5e
topology: v5e:2x2
jax: 0.10.0
libtpu: 0.0.40
codegen_flags: <defaults>
</compile_context>

<pallas_src>
import jax
import jax.numpy as jnp
from jax import lax
from jax.experimental import pallas as pl
from jax.experimental.pallas import tpu as pltpu


def bigru_kernel(gi_ref, whh_ref, bhn_ref, y_ref, state_ref, h_ref):
    """Fused bidirectional GRU recurrence (PyTorch gate order r, z, n).

    gi_ref:    (Tc, 2*bs, 3H) chunk of hoisted input pre-activations.
               rows 0:bs  = forward gates at time  t = chunk*Tc + s
               rows bs:   = backward gates at time L-1-(chunk*Tc + s)
               gate lanes [r | z | n]; r,z already include b_ih+b_hh, n has b_ih.
    whh_ref:   (2, H, 3H) hidden weights, pre-transposed so gh = h @ whh[d].
    bhn_ref:   (2*bs, H)  b_hn broadcast per direction (lives in r-gated term).
    y_ref:     (Tc, 2*bs, H) step-major outputs (backward half time-reversed).
    state_ref: (2*bs, H)  final hidden states [h_f rows | h_b rows].
    h_ref:     (2*bs, H)  persistent carry across time chunks (VMEM scratch).
    """
    Tc, bs2, H3 = gi_ref.shape
    H = H3 // 3
    bs = bs2 // 2

    @pl.when(pl.program_id(0) == 0)
    def _init():
        h_ref[...] = jnp.zeros_like(h_ref)

    whh_f = whh_ref[0]          # (H, 3H)
    whh_b = whh_ref[1]          # (H, 3H)
    bhn = bhn_ref[...]          # (2*bs, H)

    def sigmoid(x):             # single EUP tanh per call
        return 0.5 * (jnp.tanh(0.5 * x) + 1.0)

    h = h_ref[...]              # (2*bs, H) f32 carry
    for s in range(Tc):         # chunk-bounded static unroll
        hm = h.astype(whh_f.dtype)
        gh = jnp.concatenate(
            [jnp.dot(hm[:bs], whh_f, preferred_element_type=jnp.float32),
             jnp.dot(hm[bs:], whh_b, preferred_element_type=jnp.float32)],
            axis=0)                                   # (2*bs, 3H)
        gi = gi_ref[s]                                # (2*bs, 3H)
        r = sigmoid(gi[:, 0:H] + gh[:, 0:H])
        z = sigmoid(gi[:, H:2 * H] + gh[:, H:2 * H])
        n = jnp.tanh(gi[:, 2 * H:] + r * (gh[:, 2 * H:] + bhn))
        h = n + z * (h - n)                           # == (1-z)*n + z*h
        y_ref[s] = h                                  # contiguous (2*bs, H) store
    h_ref[...] = h
    state_ref[...] = h


def init_params(key, vocab_size, embedding_size, hidden_size):
    """Deterministic parameter init mimicking PyTorch defaults (PyTorch layout)."""
    ks = jax.random.split(key, 9)
    bound = 1.0 / float(hidden_size) ** 0.5
    u = lambda k, shape: jax.random.uniform(
        k, shape, jnp.float32, minval=-bound, maxval=bound)
    H, E = hidden_size, embedding_size
    return dict(
        embedding=jax.random.normal(ks[0], (vocab_size, E), jnp.float32),
        wih_f=u(ks[1], (3 * H, E)),
        whh_f=u(ks[2], (3 * H, H)),
        bih_f=u(ks[3], (1, 3 * H)),
        bhh_f=u(ks[4], (1, 3 * H)),
        wih_b=u(ks[5], (3 * H, E)),
        whh_b=u(ks[6], (3 * H, H)),
        bih_b=u(ks[7], (1, 3 * H)),
        bhh_b=u(ks[8], (1, 3 * H)),
    )


def _pack_gru_weights(params, bs, matmul_dtype):
    """PyTorch-layout weights -> kernel layout (pre-transposed, gate on lanes)."""
    H = params['whh_f'].shape[1]
    # Input weights (E, 6H): columns [f_r|f_z|f_n|b_r|b_z|b_n].
    wih = jnp.concatenate([params['wih_f'].T, params['wih_b'].T],
                          axis=1).astype(jnp.float32)
    # Hidden weights (2, H, 3H): gh = h @ whh[d], one fused dot per direction.
    whh = jnp.stack([params['whh_f'].T, params['whh_b'].T],
                    axis=0).astype(matmul_dtype)

    def fused_bias(bih, bhh):   # fold b_hh into r,z; n gate keeps b_ih only
        return jnp.concatenate([bih[:, :2 * H] + bhh[:, :2 * H], bih[:, 2 * H:]],
                               axis=1)

    bi = jnp.concatenate([fused_bias(params['bih_f'], params['bhh_f']),
                          fused_bias(params['bih_b'], params['bhh_b'])],
                         axis=1).astype(jnp.float32)                  # (1, 6H)
    # b_hn per direction, pre-broadcast to the (2*bs, H) stacked-state layout.
    bhn = jnp.concatenate(
        [jnp.broadcast_to(params['bhh_f'][:, 2 * H:], (bs, H)),
         jnp.broadcast_to(params['bhh_b'][:, 2 * H:], (bs, H))],
        axis=0).astype(jnp.float32)                                   # (2*bs, H)
    return wih, whh, bi, bhn


def simple_gru_encoder(src, params, *, time_chunk=16, matmul_dtype=jnp.float32):
    """Forward pass of SimpleGRUEncoder (eval mode).

    src: (bs, L) int32 token ids.
    Returns {'encoder_output': (bs, L, 2H), 'hidden': (1, bs, 2H)}.
    """
    # TODO(synk): nn.Dropout(p=0.5) treated as identity (eval-mode forward).
    emb_tbl = params['embedding']
    vocab, E = emb_tbl.shape
    H = params['whh_f'].shape[1]
    bs, L = src.shape
    H3 = 3 * H

    wih, whh, bi, bhn = _pack_gru_weights(params, bs, matmul_dtype)

    # ---- Hoisted input projection (wrapper-side glue, outside the kernel) ----
    if vocab <= bs * L:
        # Fold W_ih + biases into the embedding table, then gather gates.
        gate_tbl = emb_tbl.astype(jnp.float32) @ wih + bi          # (vocab, 6H)
        gi = jnp.take(gate_tbl, src, axis=0)                       # (bs, L, 6H)
    else:
        emb = jnp.take(emb_tbl, src, axis=0).astype(jnp.float32)   # (bs, L, E)
        gi = jnp.einsum('ble,eg->blg', emb, wih) + bi              # (bs, L, 6H)

    # Step-major layout: rows 0:bs = fwd gates at time s, rows bs: = bwd gates
    # at time L-1-s (backward half pre-reversed so both chains share the index).
    gi = jnp.transpose(gi, (1, 0, 2))                              # (L, bs, 6H)
    gi = jnp.concatenate([gi[:, :, :H3], gi[::-1, :, H3:]], axis=1)  # (L, 2bs, 3H)

    # Pad L to a chunk multiple with identity GRU steps (z-gate preact = 1e4
    # => z == 1 exactly => h' == h), so padding never perturbs the final state.
    Tc = min(time_chunk, L)
    L_pad = -(-L // Tc) * Tc
    if L_pad != L:
        pad = jnp.zeros((L_pad - L, 2 * bs, H3), jnp.float32)
        pad = pad.at[:, :, H:2 * H].set(1e4)
        gi = jnp.concatenate([gi, pad], axis=0)
    n_chunks = L_pad // Tc

    # VMEM budget: double-buffered gi/y chunks + weights + small state buffers.
    est_bytes = (2 * Tc * 2 * bs * (H3 + H) * 4
                 + int(whh.size) * jnp.dtype(matmul_dtype).itemsize
                 + 6 * 2 * bs * H * 4)
    vmem_limit = min(128 * 1024 * 1024, est_bytes + (4 << 20))

    y, state = pl.pallas_call(
        bigru_kernel,
        out_shape=(jax.ShapeDtypeStruct((L_pad, 2 * bs, H), jnp.float32),
                   jax.ShapeDtypeStruct((2 * bs, H), jnp.float32)),
        grid=(n_chunks,),
        in_specs=[
            pl.BlockSpec((Tc, 2 * bs, H3), lambda c: (c, 0, 0)),   # gi chunk
            pl.BlockSpec((2, H, H3), lambda c: (0, 0, 0)),         # whh (resident)
            pl.BlockSpec((2 * bs, H), lambda c: (0, 0)),           # bhn (resident)
        ],
        out_specs=(
            pl.BlockSpec((Tc, 2 * bs, H), lambda c: (c, 0, 0)),    # y chunk
            pl.BlockSpec((2 * bs, H), lambda c: (0, 0)),           # final state
        ),
        scratch_shapes=[pltpu.VMEM((2 * bs, H), jnp.float32)],     # h carry
        compiler_params=pltpu.CompilerParams(
            dimension_semantics=("arbitrary",),
            vmem_limit_bytes=vmem_limit),
    )(gi, whh, bhn)

    # Wrapper-side layout plumbing back to (bs, L, 2H).
    y = y[:L]                                                      # (L, 2bs, H)
    out_f = jnp.transpose(y[:, :bs, :], (1, 0, 2))                 # (bs, L, H)
    out_b = jnp.transpose(y[::-1, bs:, :], (1, 0, 2))              # (bs, L, H)
    out = jnp.concatenate([out_f, out_b], axis=-1)                 # (bs, L, 2H)
    hidden = jnp.concatenate([state[:bs], state[bs:]], axis=-1)[None]  # (1,bs,2H)
    return {'encoder_output': out, 'hidden': hidden}


def gru_reference(src, params):
    """Pure-JAX reference matching PyTorch nn.GRU(bidirectional=True) eval forward."""
    emb = jnp.take(params['embedding'], src, axis=0).astype(jnp.float32)
    bs, L, _ = emb.shape
    H = params['whh_f'].shape[1]
    xs = jnp.transpose(emb, (1, 0, 2))  # (L, bs, E)

    def run(wih, whh, bih, bhh, reverse):
        def step(h, x_t):
            gi = x_t @ wih.T + bih
            gh = h @ whh.T + bhh
            r = jax.nn.sigmoid(gi[:, :H] + gh[:, :H])
            z = jax.nn.sigmoid(gi[:, H:2 * H] + gh[:, H:2 * H])
            n = jnp.tanh(gi[:, 2 * H:] + r * gh[:, 2 * H:])
            h_new = (1.0 - z) * n + z * h
            return h_new, h_new
        h_last, ys = lax.scan(step, jnp.zeros((bs, H), jnp.float32), xs,
                              reverse=reverse)
        return jnp.transpose(ys, (1, 0, 2)), h_last

    out_f, h_f = run(params['wih_f'], params['whh_f'],
                     params['bih_f'], params['bhh_f'], False)
    out_b, h_b = run(params['wih_b'], params['whh_b'],
                     params['bih_b'], params['bhh_b'], True)
    return {'encoder_output': jnp.concatenate([out_f, out_b], axis=-1),
            'hidden': jnp.concatenate([h_f, h_b], axis=-1)[None]}


if __name__ == "__main__":
    vocab_size = 50
    embedding_size = 16
    hidden_size = 32
    bs, length = 2, 8

    key = jax.random.PRNGKey(0)
    pkey, skey = jax.random.split(key)
    params = init_params(pkey, vocab_size, embedding_size, hidden_size)
    src = jax.random.randint(skey, (bs, length), 0, vocab_size, dtype=jnp.int32)

    result = simple_gru_encoder(src, params)
    jax.block_until_ready(result)

    assert result['encoder_output'].shape == (bs, length, 2 * hidden_size)
    assert result['hidden'].shape == (1, bs, 2 * hidden_size)

    # Parity against a pure-JAX (PyTorch-semantics) reference.
    ref = gru_reference(src, params)
    assert jnp.allclose(result['encoder_output'], ref['encoder_output'],
                        atol=1e-4, rtol=1e-4)
    assert jnp.allclose(result['hidden'], ref['hidden'], atol=1e-4, rtol=1e-4)

    print("KERNEL_OK")
</pallas_src>

<mosaic_0001>
module attributes {stable_mosaic.version = 11 : i64} {
  func.func @bigru_kernel(%arg0: i32, %arg1: memref<8x4x96xf32, #tpu.memory_space<vmem>>, %arg2: memref<2x32x96xf32, #tpu.memory_space<vmem>>, %arg3: memref<4x32xf32, #tpu.memory_space<vmem>>, %arg4: memref<8x4x32xf32, #tpu.memory_space<vmem>>, %arg5: memref<4x32xf32, #tpu.memory_space<vmem>>, %arg6: memref<4x32xf32, #tpu.memory_space<vmem>>) attributes {dimension_semantics = [#tpu.dimension_semantics<arbitrary>], iteration_bounds = array<i64: 1>, scalar_prefetch = 0 : i64, scratch_operands = 1 : i64, tpu.core_type = #tpu.core_type<tc>, window_params = [{transform_indices = @transform_0, window_bounds = array<i64: 8, 4, 96>}, {pipeline_mode = #tpu.pipeline_mode<synchronous>, transform_indices = @transform_1, window_bounds = array<i64: 2, 32, 96>}, {pipeline_mode = #tpu.pipeline_mode<synchronous>, transform_indices = @transform_2, window_bounds = array<i64: 4, 32>}, {transform_indices = @transform_3, window_bounds = array<i64: 8, 4, 32>}, {pipeline_mode = #tpu.pipeline_mode<synchronous>, transform_indices = @transform_4, window_bounds = array<i64: 4, 32>}]} {
    %c0_i32 = arith.constant 0 : i32
    %0 = arith.cmpi eq, %arg0, %c0_i32 : i32
    %1 = arith.extui %0 : i1 to i32
    %c0_i32_0 = arith.constant 0 : i32
    %2 = arith.cmpi ne, %1, %c0_i32_0 : i32
    scf.if %2 {
      %cst_118 = arith.constant 0.000000e+00 : f32
      %323 = vector.broadcast %cst_118 : f32 to vector<4x32xf32>
      %c0_119 = arith.constant 0 : index
      %c0_120 = arith.constant 0 : index
      %324 = vector.load %arg6[%c0_119, %c0_120] : memref<4x32xf32, #tpu.memory_space<vmem>>, vector<4x32xf32>
      tpu.vector_store %arg6[%c0_119, %c0_120], %323 {strides = array<i32>} : memref<4x32xf32, #tpu.memory_space<vmem>>, vector<4x32xf32>,
    } else {
    }
    %c0 = arith.constant 0 : index
    %c0_1 = arith.constant 0 : index
    %c0_2 = arith.constant 0 : index
    %3 = vector.load %arg2[%c0, %c0_1, %c0_2] : memref<2x32x96xf32, #tpu.memory_space<vmem>>, vector<1x32x96xf32>
    %4 = vector.shape_cast %3 : vector<1x32x96xf32> to vector<32x96xf32>
    %c1 = arith.constant 1 : index
    %c0_3 = arith.constant 0 : index
    %c0_4 = arith.constant 0 : index
    %5 = vector.load %arg2[%c1, %c0_3, %c0_4] : memref<2x32x96xf32, #tpu.memory_space<vmem>>, vector<1x32x96xf32>
    %6 = vector.shape_cast %5 : vector<1x32x96xf32> to vector<32x96xf32>
    %c0_5 = arith.constant 0 : index
    %c0_6 = arith.constant 0 : index
    %7 = vector.load %arg3[%c0_5, %c0_6] : memref<4x32xf32, #tpu.memory_space<vmem>>, vector<4x32xf32>
    %c0_7 = arith.constant 0 : index
    %c0_8 = arith.constant 0 : index
    %8 = vector.load %arg6[%c0_7, %c0_8] : memref<4x32xf32, #tpu.memory_space<vmem>>, vector<4x32xf32>
    %9 = vector.extract_strided_slice %8 {offsets = [0, 0], sizes = [2, 32], strides = [1, 1]} : vector<4x32xf32> to vector<2x32xf32>
    %cst = arith.constant dense<0.000000e+00> : vector<2x96xf32>
    %10 = tpu.matmul %9, %4, %cst {dimension_numbers = #tpu.dot_dimension_numbers<[1], [0], [0], [1], [0, 0, 1, 1], [], []>} : vector<2x32xf32>, vector<32x96xf32>, vector<2x96xf32> -> vector<2x96xf32>
    %11 = vector.extract_strided_slice %8 {offsets = [2, 0], sizes = [2, 32], strides = [1, 1]} : vector<4x32xf32> to vector<2x32xf32>
    %cst_9 = arith.constant dense<0.000000e+00> : vector<2x96xf32>
    %12 = tpu.matmul %11, %6, %cst_9 {dimension_numbers = #tpu.dot_dimension_numbers<[1], [0], [0], [1], [0, 0, 1, 1], [], []>} : vector<2x32xf32>, vector<32x96xf32>, vector<2x96xf32> -> vector<2x96xf32>
    %13 = tpu.concatenate %10, %12 in 0 : vector<2x96xf32>, vector<2x96xf32> -> vector<4x96xf32>
    %c0_10 = arith.constant 0 : index
    %c0_11 = arith.constant 0 : index
    %c0_12 = arith.constant 0 : index
    %14 = vector.load %arg1[%c0_10, %c0_11, %c0_12] : memref<8x4x96xf32, #tpu.memory_space<vmem>>, vector<1x4x96xf32>
    %15 = vector.shape_cast %14 : vector<1x4x96xf32> to vector<4x96xf32>
    %16 = vector.extract_strided_slice %15 {offsets = [0, 0], sizes = [4, 32], strides = [1, 1]} : vector<4x96xf32> to vector<4x32xf32>
    %17 = vector.extract_strided_slice %13 {offsets = [0, 0], sizes = [4, 32], strides = [1, 1]} : vector<4x96xf32> to vector<4x32xf32>
    %18 = arith.addf %16, %17 : vector<4x32xf32>
    %cst_13 = arith.constant 5.000000e-01 : f32
    %19 = vector.broadcast %cst_13 : f32 to vector<4x32xf32>
    %20 = arith.mulf %19, %18 : vector<4x32xf32>
    %21 = math.tanh %20 : vector<4x32xf32>
    %cst_14 = arith.constant 1.000000e+00 : f32
    %22 = vector.broadcast %cst_14 : f32 to vector<4x32xf32>
    %23 = arith.addf %21, %22 : vector<4x32xf32>
    %cst_15 = arith.constant 5.000000e-01 : f32
    %24 = vector.broadcast %cst_15 : f32 to vector<4x32xf32>
    %25 = arith.mulf %24, %23 : vector<4x32xf32>
    %26 = vector.extract_strided_slice %15 {offsets = [0, 32], sizes = [4, 32], strides = [1, 1]} : vector<4x96xf32> to vector<4x32xf32>
    %27 = vector.extract_strided_slice %13 {offsets = [0, 32], sizes = [4, 32], strides = [1, 1]} : vector<4x96xf32> to vector<4x32xf32>
    %28 = arith.addf %26, %27 : vector<4x32xf32>
    %cst_16 = arith.constant 5.000000e-01 : f32
    %29 = vector.broadcast %cst_16 : f32 to vector<4x32xf32>
    %30 = arith.mulf %29, %28 : vector<4x32xf32>
    %31 = math.tanh %30 : vector<4x32xf32>
    %cst_17 = arith.constant 1.000000e+00 : f32
    %32 = vector.broadcast %cst_17 : f32 to vector<4x32xf32>
    %33 = arith.addf %31, %32 : vector<4x32xf32>
    %cst_18 = arith.constant 5.000000e-01 : f32
    %34 = vector.broadcast %cst_18 : f32 to vector<4x32xf32>
    %35 = arith.mulf %34, %33 : vector<4x32xf32>
    %36 = vector.extract_strided_slice %15 {offsets = [0, 64], sizes = [4, 32], strides = [1, 1]} : vector<4x96xf32> to vector<4x32xf32>
    %37 = vector.extract_strided_slice %13 {offsets = [0, 64], sizes = [4, 32], strides = [1, 1]} : vector<4x96xf32> to vector<4x32xf32>
    %38 = arith.addf %37, %7 : vector<4x32xf32>
    %39 = arith.mulf %25, %38 : vector<4x32xf32>
    %40 = arith.addf %36, %39 : vector<4x32xf32>
    %41 = math.tanh %40 : vector<4x32xf32>
    %42 = arith.subf %8, %41 : vector<4x32xf32>
    %43 = arith.mulf %35, %42 : vector<4x32xf32>
    %44 = arith.addf %41, %43 : vector<4x32xf32>
    %c0_19 = arith.constant 0 : index
    %c0_20 = arith.constant 0 : index
    %c0_21 = arith.constant 0 : index
    %45 = vector.load %arg4[%c0_19, %c0_20, %c0_21] : memref<8x4x32xf32, #tpu.memory_space<vmem>>, vector<1x4x32xf32>
    %46 = vector.shape_cast %45 : vector<1x4x32xf32> to vector<4x32xf32>
    %47 = vector.shape_cast %44 : vector<4x32xf32> to vector<1x4x32xf32>
    tpu.vector_store %arg4[%c0_19, %c0_20, %c0_21], %47 {strides = array<i32>} : memref<8x4x32xf32, #tpu.memory_space<vmem>>, vector<1x4x32xf32>,
    %48 = vector.extract_strided_slice %44 {offsets = [0, 0], sizes = [2, 32], strides = [1, 1]} : vector<4x32xf32> to vector<2x32xf32>
    %cst_22 = arith.constant dense<0.000000e+00> : vector<2x96xf32>
    %49 = tpu.matmul %48, %4, %cst_22 {dimension_numbers = #tpu.dot_dimension_numbers<[1], [0], [0], [1], [0, 0, 1, 1], [], []>} : vector<2x32xf32>, vector<32x96xf32>, vector<2x96xf32> -> vector<2x96xf32>
    %50 = vector.extract_strided_slice %44 {offsets = [2, 0], sizes = [2, 32], strides = [1, 1]} : vector<4x32xf32> to vector<2x32xf32>
    %cst_23 = arith.constant dense<0.000000e+00> : vector<2x96xf32>
    %51 = tpu.matmul %50, %6, %cst_23 {dimension_numbers = #tpu.dot_dimension_numbers<[1], [0], [0], [1], [0, 0, 1, 1], [], []>} : vector<2x32xf32>, vector<32x96xf32>, vector<2x96xf32> -> vector<2x96xf32>
    %52 = tpu.concatenate %49, %51 in 0 : vector<2x96xf32>, vector<2x96xf32> -> vector<4x96xf32>
    %c1_24 = arith.constant 1 : index
    %c0_25 = arith.constant 0 : index
    %c0_26 = arith.constant 0 : index
    %53 = vector.load %arg1[%c1_24, %c0_25, %c0_26] : memref<8x4x96xf32, #tpu.memory_space<vmem>>, vector<1x4x96xf32>
    %54 = vector.shape_cast %53 : vector<1x4x96xf32> to vector<4x96xf32>
    %55 = vector.extract_strided_slice %54 {offsets = [0, 0], sizes = [4, 32], strides = [1, 1]} : vector<4x96xf32> to vector<4x32xf32>
    %56 = vector.extract_strided_slice %52 {offsets = [0, 0], sizes = [4, 32], strides = [1, 1]} : vector<4x96xf32> to vector<4x32xf32>
    %57 = arith.addf %55, %56 : vector<4x32xf32>
    %cst_27 = arith.constant 5.000000e-01 : f32
    %58 = vector.broadcast %cst_27 : f32 to vector<4x32xf32>
    %59 = arith.mulf %58, %57 : vector<4x32xf32>
    %60 = math.tanh %59 : vector<4x32xf32>
    %cst_28 = arith.constant 1.000000e+00 : f32
    %61 = vector.broadcast %cst_28 : f32 to vector<4x32xf32>
    %62 = arith.addf %60, %61 : vector<4x32xf32>
    %cst_29 = arith.constant 5.000000e-01 : f32
    %63 = vector.broadcast %cst_29 : f32 to vector<4x32xf32>
    %64 = arith.mulf %63, %62 : vector<4x32xf32>
    %65 = vector.extract_strided_slice %54 {offsets = [0, 32], sizes = [4, 32], strides = [1, 1]} : vector<4x96xf32> to vector<4x32xf32>
    %66 = vector.extract_strided_slice %52 {offsets = [0, 32], sizes = [4, 32], strides = [1, 1]} : vector<4x96xf32> to vector<4x32xf32>
    %67 = arith.addf %65, %66 : vector<4x32xf32>
    %cst_30 = arith.constant 5.000000e-01 : f32
    %68 = vector.broadcast %cst_30 : f32 to vector<4x32xf32>
    %69 = arith.mulf %68, %67 : vector<4x32xf32>
    %70 = math.tanh %69 : vector<4x32xf32>
    %cst_31 = arith.constant 1.000000e+00 : f32
    %71 = vector.broadcast %cst_31 : f32 to vector<4x32xf32>
    %72 = arith.addf %70, %71 : vector<4x32xf32>
    %cst_32 = arith.constant 5.000000e-01 : f32
    %73 = vector.broadcast %cst_32 : f32 to vector<4x32xf32>
    %74 = arith.mulf %73, %72 : vector<4x32xf32>
    %75 = vector.extract_strided_slice %54 {offsets = [0, 64], sizes = [4, 32], strides = [1, 1]} : vector<4x96xf32> to vector<4x32xf32>
    %76 = vector.extract_strided_slice %52 {offsets = [0, 64], sizes = [4, 32], strides = [1, 1]} : vector<4x96xf32> to vector<4x32xf32>
    %77 = arith.addf %76, %7 : vector<4x32xf32>
    %78 = arith.mulf %64, %77 : vector<4x32xf32>
    %79 = arith.addf %75, %78 : vector<4x32xf32>
    %80 = math.tanh %79 : vector<4x32xf32>
    %81 = arith.subf %44, %80 : vector<4x32xf32>
    %82 = arith.mulf %74, %81 : vector<4x32xf32>
    %83 = arith.addf %80, %82 : vector<4x32xf32>
    %c1_33 = arith.constant 1 : index
    %c0_34 = arith.constant 0 : index
    %c0_35 = arith.constant 0 : index
    %84 = vector.load %arg4[%c1_33, %c0_34, %c0_35] : memref<8x4x32xf32, #tpu.memory_space<vmem>>, vector<1x4x32xf32>
    %85 = vector.shape_cast %84 : vector<1x4x32xf32> to vector<4x32xf32>
    %86 = vector.shape_cast %83 : vector<4x32xf32> to vector<1x4x32xf32>
    tpu.vector_store %arg4[%c1_33, %c0_34, %c0_35], %86 {strides = array<i32>} : memref<8x4x32xf32, #tpu.memory_space<vmem>>, vector<1x4x32xf32>,
    %87 = vector.extract_strided_slice %83 {offsets = [0, 0], sizes = [2, 32], strides = [1, 1]} : vector<4x32xf32> to vector<2x32xf32>
    %cst_36 = arith.constant dense<0.000000e+00> : vector<2x96xf32>
    %88 = tpu.matmul %87, %4, %cst_36 {dimension_numbers = #tpu.dot_dimension_numbers<[1], [0], [0], [1], [0, 0, 1, 1], [], []>} : vector<2x32xf32>, vector<32x96xf32>, vector<2x96xf32> -> vector<2x96xf32>
    %89 = vector.extract_strided_slice %83 {offsets = [2, 0], sizes = [2, 32], strides = [1, 1]} : vector<4x32xf32> to vector<2x32xf32>
    %cst_37 = arith.constant dense<0.000000e+00> : vector<2x96xf32>
    %90 = tpu.matmul %89, %6, %cst_37 {dimension_numbers = #tpu.dot_dimension_numbers<[1], [0], [0], [1], [0, 0, 1, 1], [], []>} : vector<2x32xf32>, vector<32x96xf32>, vector<2x96xf32> -> vector<2x96xf32>
    %91 = tpu.concatenate %88, %90 in 0 : vector<2x96xf32>, vector<2x96xf32> -> vector<4x96xf32>
    %c2 = arith.constant 2 : index
    %c0_38 = arith.constant 0 : index
    %c0_39 = arith.constant 0 : index
    %92 = vector.load %arg1[%c2, %c0_38, %c0_39] : memref<8x4x96xf32, #tpu.memory_space<vmem>>, vector<1x4x96xf32>
    %93 = vector.shape_cast %92 : vector<1x4x96xf32> to vector<4x96xf32>
    %94 = vector.extract_strided_slice %93 {offsets = [0, 0], sizes = [4, 32], strides = [1, 1]} : vector<4x96xf32> to vector<4x32xf32>
    %95 = vector.extract_strided_slice %91 {offsets = [0, 0], sizes = [4, 32], strides = [1, 1]} : vector<4x96xf32> to vector<4x32xf32>
    %96 = arith.addf %94, %95 : vector<4x32xf32>
    %cst_40 = arith.constant 5.000000e-01 : f32
    %97 = vector.broadcast %cst_40 : f32 to vector<4x32xf32>
    %98 = arith.mulf %97, %96 : vector<4x32xf32>
    %99 = math.tanh %98 : vector<4x32xf32>
    %cst_41 = arith.constant 1.000000e+00 : f32
    %100 = vector.broadcast %cst_41 : f32 to vector<4x32xf32>
    %101 = arith.addf %99, %100 : vector<4x32xf32>
    %cst_42 = arith.constant 5.000000e-01 : f32
    %102 = vector.broadcast %cst_42 : f32 to vector<4x32xf32>
    %103 = arith.mulf %102, %101 : vector<4x32xf32>
    %104 = vector.extract_strided_slice %93 {offsets = [0, 32], sizes = [4, 32], strides = [1, 1]} : vector<4x96xf32> to vector<4x32xf32>
    %105 = vector.extract_strided_slice %91 {offsets = [0, 32], sizes = [4, 32], strides = [1, 1]} : vector<4x96xf32> to vector<4x32xf32>
    %106 = arith.addf %104, %105 : vector<4x32xf32>
    %cst_43 = arith.constant 5.000000e-01 : f32
    %107 = vector.broadcast %cst_43 : f32 to vector<4x32xf32>
    %108 = arith.mulf %107, %106 : vector<4x32xf32>
    %109 = math.tanh %108 : vector<4x32xf32>
    %cst_44 = arith.constant 1.000000e+00 : f32
    %110 = vector.broadcast %cst_44 : f32 to vector<4x32xf32>
    %111 = arith.addf %109, %110 : vector<4x32xf32>
    %cst_45 = arith.constant 5.000000e-01 : f32
    %112 = vector.broadcast %cst_45 : f32 to vector<4x32xf32>
    %113 = arith.mulf %112, %111 : vector<4x32xf32>
    %114 = vector.extract_strided_slice %93 {offsets = [0, 64], sizes = [4, 32], strides = [1, 1]} : vector<4x96xf32> to vector<4x32xf32>
    %115 = vector.extract_strided_slice %91 {offsets = [0, 64], sizes = [4, 32], strides = [1, 1]} : vector<4x96xf32> to vector<4x32xf32>
    %116 = arith.addf %115, %7 : vector<4x32xf32>
    %117 = arith.mulf %103, %116 : vector<4x32xf32>
    %118 = arith.addf %114, %117 : vector<4x32xf32>
    %119 = math.tanh %118 : vector<4x32xf32>
    %120 = arith.subf %83, %119 : vector<4x32xf32>
    %121 = arith.mulf %113, %120 : vector<4x32xf32>
    %122 = arith.addf %119, %121 : vector<4x32xf32>
    %c2_46 = arith.constant 2 : index
    %c0_47 = arith.constant 0 : index
    %c0_48 = arith.constant 0 : index
    %123 = vector.load %arg4[%c2_46, %c0_47, %c0_48] : memref<8x4x32xf32, #tpu.memory_space<vmem>>, vector<1x4x32xf32>
    %124 = vector.shape_cast %123 : vector<1x4x32xf32> to vector<4x32xf32>
    %125 = vector.shape_cast %122 : vector<4x32xf32> to vector<1x4x32xf32>
    tpu.vector_store %arg4[%c2_46, %c0_47, %c0_48], %125 {strides = array<i32>} : memref<8x4x32xf32, #tpu.memory_space<vmem>>, vector<1x4x32xf32>,
    %126 = vector.extract_strided_slice %122 {offsets = [0, 0], sizes = [2, 32], strides = [1, 1]} : vector<4x32xf32> to vector<2x32xf32>
    %cst_49 = arith.constant dense<0.000000e+00> : vector<2x96xf32>
    %127 = tpu.matmul %126, %4, %cst_49 {dimension_numbers = #tpu.dot_dimension_numbers<[1], [0], [0], [1], [0, 0, 1, 1], [], []>} : vector<2x32xf32>, vector<32x96xf32>, vector<2x96xf32> -> vector<2x96xf32>
    %128 = vector.extract_strided_slice %122 {offsets = [2, 0], sizes = [2, 32], strides = [1, 1]} : vector<4x32xf32> to vector<2x32xf32>
    %cst_50 = arith.constant dense<0.000000e+00> : vector<2x96xf32>
    %129 = tpu.matmul %128, %6, %cst_50 {dimension_numbers = #tpu.dot_dimension_numbers<[1], [0], [0], [1], [0, 0, 1, 1], [], []>} : vector<2x32xf32>, vector<32x96xf32>, vector<2x96xf32> -> vector<2x96xf32>
    %130 = tpu.concatenate %127, %129 in 0 : vector<2x96xf32>, vector<2x96xf32> -> vector<4x96xf32>
    %c3 = arith.constant 3 : index
    %c0_51 = arith.constant 0 : index
    %c0_52 = arith.constant 0 : index
    %131 = vector.load %arg1[%c3, %c0_51, %c0_52] : memref<8x4x96xf32, #tpu.memory_space<vmem>>, vector<1x4x96xf32>
    %132 = vector.shape_cast %131 : vector<1x4x96xf32> to vector<4x96xf32>
    %133 = vector.extract_strided_slice %132 {offsets = [0, 0], sizes = [4, 32], strides = [1, 1]} : vector<4x96xf32> to vector<4x32xf32>
    %134 = vector.extract_strided_slice %130 {offsets = [0, 0], sizes = [4, 32], strides = [1, 1]} : vector<4x96xf32> to vector<4x32xf32>
    %135 = arith.addf %133, %134 : vector<4x32xf32>
    %cst_53 = arith.constant 5.000000e-01 : f32
    %136 = vector.broadcast %cst_53 : f32 to vector<4x32xf32>
    %137 = arith.mulf %136, %135 : vector<4x32xf32>
    %138 = math.tanh %137 : vector<4x32xf32>
    %cst_54 = arith.constant 1.000000e+00 : f32
    %139 = vector.broadcast %cst_54 : f32 to vector<4x32xf32>
    %140 = arith.addf %138, %139 : vector<4x32xf32>
    %cst_55 = arith.constant 5.000000e-01 : f32
    %141 = vector.broadcast %cst_55 : f32 to vector<4x32xf32>
    %142 = arith.mulf %141, %140 : vector<4x32xf32>
    %143 = vector.extract_strided_slice %132 {offsets = [0, 32], sizes = [4, 32], strides = [1, 1]} : vector<4x96xf32> to vector<4x32xf32>
    %144 = vector.extract_strided_slice %130 {offsets = [0, 32], sizes = [4, 32], strides = [1, 1]} : vector<4x96xf32> to vector<4x32xf32>
    %145 = arith.addf %143, %144 : vector<4x32xf32>
    %cst_56 = arith.constant 5.000000e-01 : f32
    %146 = vector.broadcast %cst_56 : f32 to vector<4x32xf32>
    %147 = arith.mulf %146, %145 : vector<4x32xf32>
    %148 = math.tanh %147 : vector<4x32xf32>
    %cst_57 = arith.constant 1.000000e+00 : f32
    %149 = vector.broadcast %cst_57 : f32 to vector<4x32xf32>
    %150 = arith.addf %148, %149 : vector<4x32xf32>
    %cst_58 = arith.constant 5.000000e-01 : f32
    %151 = vector.broadcast %cst_58 : f32 to vector<4x32xf32>
    %152 = arith.mulf %151, %150 : vector<4x32xf32>
    %153 = vector.extract_strided_slice %132 {offsets = [0, 64], sizes = [4, 32], strides = [1, 1]} : vector<4x96xf32> to vector<4x32xf32>
    %154 = vector.extract_strided_slice %130 {offsets = [0, 64], sizes = [4, 32], strides = [1, 1]} : vector<4x96xf32> to vector<4x32xf32>
    %155 = arith.addf %154, %7 : vector<4x32xf32>
    %156 = arith.mulf %142, %155 : vector<4x32xf32>
    %157 = arith.addf %153, %156 : vector<4x32xf32>
    %158 = math.tanh %157 : vector<4x32xf32>
    %159 = arith.subf %122, %158 : vector<4x32xf32>
    %160 = arith.mulf %152, %159 : vector<4x32xf32>
    %161 = arith.addf %158, %160 : vector<4x32xf32>
    %c3_59 = arith.constant 3 : index
    %c0_60 = arith.constant 0 : index
    %c0_61 = arith.constant 0 : index
    %162 = vector.load %arg4[%c3_59, %c0_60, %c0_61] : memref<8x4x32xf32, #tpu.memory_space<vmem>>, vector<1x4x32xf32>
    %163 = vector.shape_cast %162 : vector<1x4x32xf32> to vector<4x32xf32>
    %164 = vector.shape_cast %161 : vector<4x32xf32> to vector<1x4x32xf32>
    tpu.vector_store %arg4[%c3_59, %c0_60, %c0_61], %164 {strides = array<i32>} : memref<8x4x32xf32, #tpu.memory_space<vmem>>, vector<1x4x32xf32>,
    %165 = vector.extract_strided_slice %161 {offsets = [0, 0], sizes = [2, 32], strides = [1, 1]} : vector<4x32xf32> to vector<2x32xf32>
    %cst_62 = arith.constant dense<0.000000e+00> : vector<2x96xf32>
    %166 = tpu.matmul %165, %4, %cst_62 {dimension_numbers = #tpu.dot_dimension_numbers<[1], [0], [0], [1], [0, 0, 1, 1], [], []>} : vector<2x32xf32>, vector<32x96xf32>, vector<2x96xf32> -> vector<2x96xf32>
    %167 = vector.extract_strided_slice %161 {offsets = [2, 0], sizes = [2, 32], strides = [1, 1]} : vector<4x32xf32> to vector<2x32xf32>
    %cst_63 = arith.constant dense<0.000000e+00> : vector<2x96xf32>
    %168 = tpu.matmul %167, %6, %cst_63 {dimension_numbers = #tpu.dot_dimension_numbers<[1], [0], [0], [1], [0, 0, 1, 1], [], []>} : vector<2x32xf32>, vector<32x96xf32>, vector<2x96xf32> -> vector<2x96xf32>
    %169 = tpu.concatenate %166, %168 in 0 : vector<2x96xf32>, vector<2x96xf32> -> vector<4x96xf32>
    %c4 = arith.constant 4 : index
    %c0_64 = arith.constant 0 : index
    %c0_65 = arith.constant 0 : index
    %170 = vector.load %arg1[%c4, %c0_64, %c0_65] : memref<8x4x96xf32, #tpu.memory_space<vmem>>, vector<1x4x96xf32>
    %171 = vector.shape_cast %170 : vector<1x4x96xf32> to vector<4x96xf32>
    %172 = vector.extract_strided_slice %171 {offsets = [0, 0], sizes = [4, 32], strides = [1, 1]} : vector<4x96xf32> to vector<4x32xf32>
    %173 = vector.extract_strided_slice %169 {offsets = [0, 0], sizes = [4, 32], strides = [1, 1]} : vector<4x96xf32> to vector<4x32xf32>
    %174 = arith.addf %172, %173 : vector<4x32xf32>
    %cst_66 = arith.constant 5.000000e-01 : f32
    %175 = vector.broadcast %cst_66 : f32 to vector<4x32xf32>
    %176 = arith.mulf %175, %174 : vector<4x32xf32>
    %177 = math.tanh %176 : vector<4x32xf32>
    %cst_67 = arith.constant 1.000000e+00 : f32
    %178 = vector.broadcast %cst_67 : f32 to vector<4x32xf32>
    %179 = arith.addf %177, %178 : vector<4x32xf32>
    %cst_68 = arith.constant 5.000000e-01 : f32
    %180 = vector.broadcast %cst_68 : f32 to vector<4x32xf32>
    %181 = arith.mulf %180, %179 : vector<4x32xf32>
    %182 = vector.extract_strided_slice %171 {offsets = [0, 32], sizes = [4, 32], strides = [1, 1]} : vector<4x96xf32> to vector<4x32xf32>
    %183 = vector.extract_strided_slice %169 {offsets = [0, 32], sizes = [4, 32], strides = [1, 1]} : vector<4x96xf32> to vector<4x32xf32>
    %184 = arith.addf %182, %183 : vector<4x32xf32>
    %cst_69 = arith.constant 5.000000e-01 : f32
    %185 = vector.broadcast %cst_69 : f32 to vector<4x32xf32>
    %186 = arith.mulf %185, %184 : vector<4x32xf32>
    %187 = math.tanh %186 : vector<4x32xf32>
    %cst_70 = arith.constant 1.000000e+00 : f32
    %188 = vector.broadcast %cst_70 : f32 to vector<4x32xf32>
    %189 = arith.addf %187, %188 : vector<4x32xf32>
    %cst_71 = arith.constant 5.000000e-01 : f32
    %190 = vector.broadcast %cst_71 : f32 to vector<4x32xf32>
    %191 = arith.mulf %190, %189 : vector<4x32xf32>
    %192 = vector.extract_strided_slice %171 {offsets = [0, 64], sizes = [4, 32], strides = [1, 1]} : vector<4x96xf32> to vector<4x32xf32>
    %193 = vector.extract_strided_slice %169 {offsets = [0, 64], sizes = [4, 32], strides = [1, 1]} : vector<4x96xf32> to vector<4x32xf32>
    %194 = arith.addf %193, %7 : vector<4x32xf32>
    %195 = arith.mulf %181, %194 : vector<4x32xf32>
    %196 = arith.addf %192, %195 : vector<4x32xf32>
    %197 = math.tanh %196 : vector<4x32xf32>
    %198 = arith.subf %161, %197 : vector<4x32xf32>
    %199 = arith.mulf %191, %198 : vector<4x32xf32>
    %200 = arith.addf %197, %199 : vector<4x32xf32>
    %c4_72 = arith.constant 4 : index
    %c0_73 = arith.constant 0 : index
    %c0_74 = arith.constant 0 : index
    %201 = vector.load %arg4[%c4_72, %c0_73, %c0_74] : memref<8x4x32xf32, #tpu.memory_space<vmem>>, vector<1x4x32xf32>
    %202 = vector.shape_cast %201 : vector<1x4x32xf32> to vector<4x32xf32>
    %203 = vector.shape_cast %200 : vector<4x32xf32> to vector<1x4x32xf32>
    tpu.vector_store %arg4[%c4_72, %c0_73, %c0_74], %203 {strides = array<i32>} : memref<8x4x32xf32, #tpu.memory_space<vmem>>, vector<1x4x32xf32>,
    %204 = vector.extract_strided_slice %200 {offsets = [0, 0], sizes = [2, 32], strides = [1, 1]} : vector<4x32xf32> to vector<2x32xf32>
    %cst_75 = arith.constant dense<0.000000e+00> : vector<2x96xf32>
    %205 = tpu.matmul %204, %4, %cst_75 {dimension_numbers = #tpu.dot_dimension_numbers<[1], [0], [0], [1], [0, 0, 1, 1], [], []>} : vector<2x32xf32>, vector<32x96xf32>, vector<2x96xf32> -> vector<2x96xf32>
    %206 = vector.extract_strided_slice %200 {offsets = [2, 0], sizes = [2, 32], strides = [1, 1]} : vector<4x32xf32> to vector<2x32xf32>
    %cst_76 = arith.constant dense<0.000000e+00> : vector<2x96xf32>
    %207 = tpu.matmul %206, %6, %cst_76 {dimension_numbers = #tpu.dot_dimension_numbers<[1], [0], [0], [1], [0, 0, 1, 1], [], []>} : vector<2x32xf32>, vector<32x96xf32>, vector<2x96xf32> -> vector<2x96xf32>
    %208 = tpu.concatenate %205, %207 in 0 : vector<2x96xf32>, vector<2x96xf32> -> vector<4x96xf32>
    %c5 = arith.constant 5 : index
    %c0_77 = arith.constant 0 : index
    %c0_78 = arith.constant 0 : index
    %209 = vector.load %arg1[%c5, %c0_77, %c0_78] : memref<8x4x96xf32, #tpu.memory_space<vmem>>, vector<1x4x96xf32>
    %210 = vector.shape_cast %209 : vector<1x4x96xf32> to vector<4x96xf32>
    %211 = vector.extract_strided_slice %210 {offsets = [0, 0], sizes = [4, 32], strides = [1, 1]} : vector<4x96xf32> to vector<4x32xf32>
    %212 = vector.extract_strided_slice %208 {offsets = [0, 0], sizes = [4, 32], strides = [1, 1]} : vector<4x96xf32> to vector<4x32xf32>
    %213 = arith.addf %211, %212 : vector<4x32xf32>
    %cst_79 = arith.constant 5.000000e-01 : f32
    %214 = vector.broadcast %cst_79 : f32 to vector<4x32xf32>
    %215 = arith.mulf %214, %213 : vector<4x32xf32>
    %216 = math.tanh %215 : vector<4x32xf32>
    %cst_80 = arith.constant 1.000000e+00 : f32
    %217 = vector.broadcast %cst_80 : f32 to vector<4x32xf32>
    %218 = arith.addf %216, %217 : vector<4x32xf32>
    %cst_81 = arith.constant 5.000000e-01 : f32
    %219 = vector.broadcast %cst_81 : f32 to vector<4x32xf32>
    %220 = arith.mulf %219, %218 : vector<4x32xf32>
    %221 = vector.extract_strided_slice %210 {offsets = [0, 32], sizes = [4, 32], strides = [1, 1]} : vector<4x96xf32> to vector<4x32xf32>
    %222 = vector.extract_strided_slice %208 {offsets = [0, 32], sizes = [4, 32], strides = [1, 1]} : vector<4x96xf32> to vector<4x32xf32>
    %223 = arith.addf %221, %222 : vector<4x32xf32>
    %cst_82 = arith.constant 5.000000e-01 : f32
    %224 = vector.broadcast %cst_82 : f32 to vector<4x32xf32>
    %225 = arith.mulf %224, %223 : vector<4x32xf32>
    %226 = math.tanh %225 : vector<4x32xf32>
    %cst_83 = arith.constant 1.000000e+00 : f32
    %227 = vector.broadcast %cst_83 : f32 to vector<4x32xf32>
    %228 = arith.addf %226, %227 : vector<4x32xf32>
    %cst_84 = arith.constant 5.000000e-01 : f32
    %229 = vector.broadcast %cst_84 : f32 to vector<4x32xf32>
    %230 = arith.mulf %229, %228 : vector<4x32xf32>
    %231 = vector.extract_strided_slice %210 {offsets = [0, 64], sizes = [4, 32], strides = [1, 1]} : vector<4x96xf32> to vector<4x32xf32>
    %232 = vector.extract_strided_slice %208 {offsets = [0, 64], sizes = [4, 32], strides = [1, 1]} : vector<4x96xf32> to vector<4x32xf32>
    %233 = arith.addf %232, %7 : vector<4x32xf32>
    %234 = arith.mulf %220, %233 : vector<4x32xf32>
    %235 = arith.addf %231, %234 : vector<4x32xf32>
    %236 = math.tanh %235 : vector<4x32xf32>
    %237 = arith.subf %200, %236 : vector<4x32xf32>
    %238 = arith.mulf %230, %237 : vector<4x32xf32>
    %239 = arith.addf %236, %238 : vector<4x32xf32>
    %c5_85 = arith.constant 5 : index
    %c0_86 = arith.constant 0 : index
    %c0_87 = arith.constant 0 : index
    %240 = vector.load %arg4[%c5_85, %c0_86, %c0_87] : memref<8x4x32xf32, #tpu.memory_space<vmem>>, vector<1x4x32xf32>
    %241 = vector.shape_cast %240 : vector<1x4x32xf32> to vector<4x32xf32>
    %242 = vector.shape_cast %239 : vector<4x32xf32> to vector<1x4x32xf32>
    tpu.vector_store %arg4[%c5_85, %c0_86, %c0_87], %242 {strides = array<i32>} : memref<8x4x32xf32, #tpu.memory_space<vmem>>, vector<1x4x32xf32>,
    %243 = vector.extract_strided_slice %239 {offsets = [0, 0], sizes = [2, 32], strides = [1, 1]} : vector<4x32xf32> to vector<2x32xf32>
    %cst_88 = arith.constant dense<0.000000e+00> : vector<2x96xf32>
    %244 = tpu.matmul %243, %4, %cst_88 {dimension_numbers = #tpu.dot_dimension_numbers<[1], [0], [0], [1], [0, 0, 1, 1], [], []>} : vector<2x32xf32>, vector<32x96xf32>, vector<2x96xf32> -> vector<2x96xf32>
    %245 = vector.extract_strided_slice %239 {offsets = [2, 0], sizes = [2, 32], strides = [1, 1]} : vector<4x32xf32> to vector<2x32xf32>
    %cst_89 = arith.constant dense<0.000000e+00> : vector<2x96xf32>
    %246 = tpu.matmul %245, %6, %cst_89 {dimension_numbers = #tpu.dot_dimension_numbers<[1], [0], [0], [1], [0, 0, 1, 1], [], []>} : vector<2x32xf32>, vector<32x96xf32>, vector<2x96xf32> -> vector<2x96xf32>
    %247 = tpu.concatenate %244, %246 in 0 : vector<2x96xf32>, vector<2x96xf32> -> vector<4x96xf32>
    %c6 = arith.constant 6 : index
    %c0_90 = arith.constant 0 : index
    %c0_91 = arith.constant 0 : index
    %248 = vector.load %arg1[%c6, %c0_90, %c0_91] : memref<8x4x96xf32, #tpu.memory_space<vmem>>, vector<1x4x96xf32>
    %249 = vector.shape_cast %248 : vector<1x4x96xf32> to vector<4x96xf32>
    %250 = vector.extract_strided_slice %249 {offsets = [0, 0], sizes = [4, 32], strides = [1, 1]} : vector<4x96xf32> to vector<4x32xf32>
    %251 = vector.extract_strided_slice %247 {offsets = [0, 0], sizes = [4, 32], strides = [1, 1]} : vector<4x96xf32> to vector<4x32xf32>
    %252 = arith.addf %250, %251 : vector<4x32xf32>
    %cst_92 = arith.constant 5.000000e-01 : f32
    %253 = vector.broadcast %cst_92 : f32 to vector<4x32xf32>
    %254 = arith.mulf %253, %252 : vector<4x32xf32>
    %255 = math.tanh %254 : vector<4x32xf32>
    %cst_93 = arith.constant 1.000000e+00 : f32
    %256 = vector.broadcast %cst_93 : f32 to vector<4x32xf32>
    %257 = arith.addf %255, %256 : vector<4x32xf32>
    %cst_94 = arith.constant 5.000000e-01 : f32
    %258 = vector.broadcast %cst_94 : f32 to vector<4x32xf32>
    %259 = arith.mulf %258, %257 : vector<4x32xf32>
    %260 = vector.extract_strided_slice %249 {offsets = [0, 32], sizes = [4, 32], strides = [1, 1]} : vector<4x96xf32> to vector<4x32xf32>
    %261 = vector.extract_strided_slice %247 {offsets = [0, 32], sizes = [4, 32], strides = [1, 1]} : vector<4x96xf32> to vector<4x32xf32>
    %262 = arith.addf %260, %261 : vector<4x32xf32>
    %cst_95 = arith.constant 5.000000e-01 : f32
    %263 = vector.broadcast %cst_95 : f32 to vector<4x32xf32>
    %264 = arith.mulf %263, %262 : vector<4x32xf32>
    %265 = math.tanh %264 : vector<4x32xf32>
    %cst_96 = arith.constant 1.000000e+00 : f32
    %266 = vector.broadcast %cst_96 : f32 to vector<4x32xf32>
    %267 = arith.addf %265, %266 : vector<4x32xf32>
    %cst_97 = arith.constant 5.000000e-01 : f32
    %268 = vector.broadcast %cst_97 : f32 to vector<4x32xf32>
    %269 = arith.mulf %268, %267 : vector<4x32xf32>
    %270 = vector.extract_strided_slice %249 {offsets = [0, 64], sizes = [4, 32], strides = [1, 1]} : vector<4x96xf32> to vector<4x32xf32>
    %271 = vector.extract_strided_slice %247 {offsets = [0, 64], sizes = [4, 32], strides = [1, 1]} : vector<4x96xf32> to vector<4x32xf32>
    %272 = arith.addf %271, %7 : vector<4x32xf32>
    %273 = arith.mulf %259, %272 : vector<4x32xf32>
    %274 = arith.addf %270, %273 : vector<4x32xf32>
    %275 = math.tanh %274 : vector<4x32xf32>
    %276 = arith.subf %239, %275 : vector<4x32xf32>
    %277 = arith.mulf %269, %276 : vector<4x32xf32>
    %278 = arith.addf %275, %277 : vector<4x32xf32>
    %c6_98 = arith.constant 6 : index
    %c0_99 = arith.constant 0 : index
    %c0_100 = arith.constant 0 : index
    %279 = vector.load %arg4[%c6_98, %c0_99, %c0_100] : memref<8x4x32xf32, #tpu.memory_space<vmem>>, vector<1x4x32xf32>
    %280 = vector.shape_cast %279 : vector<1x4x32xf32> to vector<4x32xf32>
    %281 = vector.shape_cast %278 : vector<4x32xf32> to vector<1x4x32xf32>
    tpu.vector_store %arg4[%c6_98, %c0_99, %c0_100], %281 {strides = array<i32>} : memref<8x4x32xf32, #tpu.memory_space<vmem>>, vector<1x4x32xf32>,
    %282 = vector.extract_strided_slice %278 {offsets = [0, 0], sizes = [2, 32], strides = [1, 1]} : vector<4x32xf32> to vector<2x32xf32>
    %cst_101 = arith.constant dense<0.000000e+00> : vector<2x96xf32>
    %283 = tpu.matmul %282, %4, %cst_101 {dimension_numbers = #tpu.dot_dimension_numbers<[1], [0], [0], [1], [0, 0, 1, 1], [], []>} : vector<2x32xf32>, vector<32x96xf32>, vector<2x96xf32> -> vector<2x96xf32>
    %284 = vector.extract_strided_slice %278 {offsets = [2, 0], sizes = [2, 32], strides = [1, 1]} : vector<4x32xf32> to vector<2x32xf32>
    %cst_102 = arith.constant dense<0.000000e+00> : vector<2x96xf32>
    %285 = tpu.matmul %284, %6, %cst_102 {dimension_numbers = #tpu.dot_dimension_numbers<[1], [0], [0], [1], [0, 0, 1, 1], [], []>} : vector<2x32xf32>, vector<32x96xf32>, vector<2x96xf32> -> vector<2x96xf32>
    %286 = tpu.concatenate %283, %285 in 0 : vector<2x96xf32>, vector<2x96xf32> -> vector<4x96xf32>
    %c7 = arith.constant 7 : index
    %c0_103 = arith.constant 0 : index
    %c0_104 = arith.constant 0 : index
    %287 = vector.load %arg1[%c7, %c0_103, %c0_104] : memref<8x4x96xf32, #tpu.memory_space<vmem>>, vector<1x4x96xf32>
    %288 = vector.shape_cast %287 : vector<1x4x96xf32> to vector<4x96xf32>
    %289 = vector.extract_strided_slice %288 {offsets = [0, 0], sizes = [4, 32], strides = [1, 1]} : vector<4x96xf32> to vector<4x32xf32>
    %290 = vector.extract_strided_slice %286 {offsets = [0, 0], sizes = [4, 32], strides = [1, 1]} : vector<4x96xf32> to vector<4x32xf32>
    %291 = arith.addf %289, %290 : vector<4x32xf32>
    %cst_105 = arith.constant 5.000000e-01 : f32
    %292 = vector.broadcast %cst_105 : f32 to vector<4x32xf32>
    %293 = arith.mulf %292, %291 : vector<4x32xf32>
    %294 = math.tanh %293 : vector<4x32xf32>
    %cst_106 = arith.constant 1.000000e+00 : f32
    %295 = vector.broadcast %cst_106 : f32 to vector<4x32xf32>
    %296 = arith.addf %294, %295 : vector<4x32xf32>
    %cst_107 = arith.constant 5.000000e-01 : f32
    %297 = vector.broadcast %cst_107 : f32 to vector<4x32xf32>
    %298 = arith.mulf %297, %296 : vector<4x32xf32>
    %299 = vector.extract_strided_slice %288 {offsets = [0, 32], sizes = [4, 32], strides = [1, 1]} : vector<4x96xf32> to vector<4x32xf32>
    %300 = vector.extract_strided_slice %286 {offsets = [0, 32], sizes = [4, 32], strides = [1, 1]} : vector<4x96xf32> to vector<4x32xf32>
    %301 = arith.addf %299, %300 : vector<4x32xf32>
    %cst_108 = arith.constant 5.000000e-01 : f32
    %302 = vector.broadcast %cst_108 : f32 to vector<4x32xf32>
    %303 = arith.mulf %302, %301 : vector<4x32xf32>
    %304 = math.tanh %303 : vector<4x32xf32>
    %cst_109 = arith.constant 1.000000e+00 : f32
    %305 = vector.broadcast %cst_109 : f32 to vector<4x32xf32>
    %306 = arith.addf %304, %305 : vector<4x32xf32>
    %cst_110 = arith.constant 5.000000e-01 : f32
    %307 = vector.broadcast %cst_110 : f32 to vector<4x32xf32>
    %308 = arith.mulf %307, %306 : vector<4x32xf32>
    %309 = vector.extract_strided_slice %288 {offsets = [0, 64], sizes = [4, 32], strides = [1, 1]} : vector<4x96xf32> to vector<4x32xf32>
    %310 = vector.extract_strided_slice %286 {offsets = [0, 64], sizes = [4, 32], strides = [1, 1]} : vector<4x96xf32> to vector<4x32xf32>
    %311 = arith.addf %310, %7 : vector<4x32xf32>
    %312 = arith.mulf %298, %311 : vector<4x32xf32>
    %313 = arith.addf %309, %312 : vector<4x32xf32>
    %314 = math.tanh %313 : vector<4x32xf32>
    %315 = arith.subf %278, %314 : vector<4x32xf32>
    %316 = arith.mulf %308, %315 : vector<4x32xf32>
    %317 = arith.addf %314, %316 : vector<4x32xf32>
    %c7_111 = arith.constant 7 : index
    %c0_112 = arith.constant 0 : index
    %c0_113 = arith.constant 0 : index
    %318 = vector.load %arg4[%c7_111, %c0_112, %c0_113] : memref<8x4x32xf32, #tpu.memory_space<vmem>>, vector<1x4x32xf32>
    %319 = vector.shape_cast %318 : vector<1x4x32xf32> to vector<4x32xf32>
    %320 = vector.shape_cast %317 : vector<4x32xf32> to vector<1x4x32xf32>
    tpu.vector_store %arg4[%c7_111, %c0_112, %c0_113], %320 {strides = array<i32>} : memref<8x4x32xf32, #tpu.memory_space<vmem>>, vector<1x4x32xf32>,
    %c0_114 = arith.constant 0 : index
    %c0_115 = arith.constant 0 : index
    %321 = vector.load %arg6[%c0_114, %c0_115] : memref<4x32xf32, #tpu.memory_space<vmem>>, vector<4x32xf32>
    tpu.vector_store %arg6[%c0_114, %c0_115], %317 {strides = array<i32>} : memref<4x32xf32, #tpu.memory_space<vmem>>, vector<4x32xf32>,
    %c0_116 = arith.constant 0 : index
    %c0_117 = arith.constant 0 : index
    %322 = vector.load %arg5[%c0_116, %c0_117] : memref<4x32xf32, #tpu.memory_space<vmem>>, vector<4x32xf32>
    tpu.vector_store %arg5[%c0_116, %c0_117], %317 {strides = array<i32>} : memref<4x32xf32, #tpu.memory_space<vmem>>, vector<4x32xf32>,
    return
  }
  func.func @transform_0(%arg0: i32) -> (i32, i32, i32) {
    %c0_i32 = arith.constant 0 : i32
    %c0_i32_0 = arith.constant 0 : i32
    %c0_i32_1 = arith.constant 0 : i32
    return %arg0, %c0_i32, %c0_i32_0 : i32, i32, i32
  }
  func.func @transform_1(%arg0: i32) -> (i32, i32, i32) {
    %c0_i32 = arith.constant 0 : i32
    %c0_i32_0 = arith.constant 0 : i32
    %c0_i32_1 = arith.constant 0 : i32
    %c0_i32_2 = arith.constant 0 : i32
    return %c0_i32, %c0_i32_0, %c0_i32_1 : i32, i32, i32
  }
  func.func @transform_2(%arg0: i32) -> (i32, i32) {
    %c0_i32 = arith.constant 0 : i32
    %c0_i32_0 = arith.constant 0 : i32
    %c0_i32_1 = arith.constant 0 : i32
    return %c0_i32, %c0_i32_0 : i32, i32
  }
  func.func @transform_3(%arg0: i32) -> (i32, i32, i32) {
    %c0_i32 = arith.constant 0 : i32
    %c0_i32_0 = arith.constant 0 : i32
    %c0_i32_1 = arith.constant 0 : i32
    return %arg0, %c0_i32, %c0_i32_0 : i32, i32, i32
  }
  func.func @transform_4(%arg0: i32) -> (i32, i32) {
    %c0_i32 = arith.constant 0 : i32
    %c0_i32_0 = arith.constant 0 : i32
    %c0_i32_1 = arith.constant 0 : i32
    return %c0_i32, %c0_i32_0 : i32, i32
  }
}

</mosaic_0001>

<llo_original>
// kernel: tpu_custom_call.1
$region0: #{tpu_custom_call.1}
  #allocation0 [shape = 'u32[]', space=smem, size = 0x4, offset = 0x4, fixed_abs, tag = 'smem constant byte address 0x4 - core index']
  #allocation1 [shape = 'u32[72,128]{1,0:T(1,128)}', space=vmem, size = 0x9000, scoped, tag = 'internal scratch']
  #allocation2 [shape = 'f32[4,32]{1,0:T(4,128)}', space=vmem, size = 0x800, scoped, tag = 'scratch operand']
  %s0 = inlined_call_operand.hbm [shape: f32[8,4,96], index: 0, kind: input, shape index: {}]
  %s1 = inlined_call_operand.hbm [shape: f32[2,32,96], index: 1, kind: input, shape index: {}]
  %s2 = inlined_call_operand.hbm [shape: f32[4,32], index: 2, kind: input, shape index: {}]
  %s3 = inlined_call_operand.hbm [shape: f32[8,4,32], index: 3, kind: output, shape index: {0}]
  %s4 = inlined_call_operand.hbm [shape: f32[4,32], index: 4, kind: output, shape index: {1}]
  %5 = xla_tuple %s3, %s4
  %s6 = sld [smem:[#allocation0]]
  $region46: #{tpu_custom_call.1} parent=0
    _
  %s8 = ssub.s32 1, %s6
  %s9 = scalar_select 0, %s8, %s6
  $region1: #{tpu_custom_call.1} parent=0
    #allocation3 [shape = 'u8[16384]{0}', space=vmem, size = 0x4000, scoped, tag = 'input window, operand 0, single buffered']
    #allocation4 [shape = 's32[1]{0}', space=sflag, size = 0x4, scoped, tag = 'scoped memory for tpu_custom_call.1']
    #allocation5 [shape = 's32[1]{0}', space=sflag, size = 0x4, scoped, tag = 'scoped memory for tpu_custom_call.1']
    #allocation6 [shape = 'u8[32768]{0}', space=vmem, size = 0x8000, scoped, tag = 'input window, operand 1, single buffered']
    #allocation7 [shape = 's32[1]{0}', space=sflag, size = 0x4, scoped, tag = 'scoped memory for tpu_custom_call.1']
    #allocation8 [shape = 'u8[2048]{0}', space=vmem, size = 0x800, scoped, tag = 'input window, operand 2, single buffered']
    #allocation9 [shape = 'u8[16384]{0}', space=vmem, size = 0x4000, scoped, tag = 'output window, operand 0, single buffered']
    #allocation10 [shape = 'u8[2048]{0}', space=vmem, size = 0x800, scoped, tag = 'output window, operand 1, single buffered']
    #allocation11 [shape = 's32[1]{0}', space=sflag, size = 0x4, scoped, tag = 'scoped memory for tpu_custom_call.1']
    %10 = vsyncpa [#allocation4], 0
    %11 = vsyncpa [#allocation7], 0
    %12 = vsyncpa [#allocation5], 0
    %13 = vsyncpa [#allocation11], 0
    // Predicated region
    $region2: #{tpu_custom_call.1} parent=1 // pred_check
      _
    $region3: #{tpu_custom_call.1} parent=1 // pred_check_branch
      %15 = sbr.rel (0) target = $region5
    $region4: #{tpu_custom_call.1} parent=1 // pred_region
      %17 = vsyncadd [#allocation4], 0
      %s18 = sshll.u32 %s0, 4
      %s19 = int_to_ptr.hbm [resolvable:$true] %s18
      %s20 = sshll.u32 [#allocation3], 4
      %s21 = int_to_ptr.vmem [resolvable:$true] %s20
      %26 = dma.hbm_to_vmem [thread:$0]  %s19, 512, %s21, [#allocation4], 64, 64, 4
    $region5: #{tpu_custom_call.1} parent=1 // pred_fallthru
      _
    // Predicated region
    $region6: #{tpu_custom_call.1} parent=1 // pred_check
      _
    $region7: #{tpu_custom_call.1} parent=1 // pred_check_branch
      %28 = sbr.rel (0) target = $region9
    $region8: #{tpu_custom_call.1} parent=1 // pred_region
      %30 = vsyncadd [#allocation7], 0
      %s31 = sshll.u32 %s1, 4
      %s32 = int_to_ptr.hbm [resolvable:$true] %s31
      %s33 = sshll.u32 [#allocation6], 4
      %s34 = int_to_ptr.vmem [resolvable:$true] %s33
      %39 = dma.hbm_to_vmem [thread:$0]  %s32, 1024, %s34, [#allocation7], 128, 128, 8
    $region9: #{tpu_custom_call.1} parent=1 // pred_fallthru
      _
    // Predicated region
    $region10: #{tpu_custom_call.1} parent=1 // pred_check
      _
    $region11: #{tpu_custom_call.1} parent=1 // pred_check_branch
      %41 = sbr.rel (0) target = $region13
    $region12: #{tpu_custom_call.1} parent=1 // pred_region
      %43 = vsyncadd [#allocation7], 0
      %s45 = sshll.u32 %s2, 4
      %s46 = int_to_ptr.hbm [resolvable:$true] %s45
      %s47 = sshll.u32 [#allocation8], 4
      %s48 = int_to_ptr.vmem [resolvable:$true] %s47
      %50 = dma.hbm_to_vmem [thread:$0]  %s46, 64, %s48, [#allocation7]
    $region13: #{tpu_custom_call.1} parent=1 // pred_fallthru
      _
    // Predicated region
    $region14: #{tpu_custom_call.1} parent=1 // pred_check
      _
    $region15: #{tpu_custom_call.1} parent=1 // pred_check_branch
      %52 = sbr.rel (0) target = $region17
    $region16: #{tpu_custom_call.1} parent=1 // pred_region
      %54 = dma.done [#allocation4], 512
    $region17: #{tpu_custom_call.1} parent=1 // pred_fallthru
      _
    // Predicated region
    $region18: #{tpu_custom_call.1} parent=1 // pred_check
      _
    $region19: #{tpu_custom_call.1} parent=1 // pred_check_branch
      %56 = sbr.rel (0) target = $region21
    $region20: #{tpu_custom_call.1} parent=1 // pred_region
      %58 = dma.done [#allocation7], 1024
    $region21: #{tpu_custom_call.1} parent=1 // pred_fallthru
      _
    // Predicated region
    $region22: #{tpu_custom_call.1} parent=1 // pred_check
      _
    $region23: #{tpu_custom_call.1} parent=1 // pred_check_branch
      %60 = sbr.rel (0) target = $region25
    $region24: #{tpu_custom_call.1} parent=1 // pred_region
      %62 = dma.done [#allocation7], 64
    $region25: #{tpu_custom_call.1} parent=1 // pred_fallthru
      _
    %p63 = scmp.eq.s32.totalorder 0, 0
    // Predicated region
    $region26: #{tpu_custom_call.1} parent=1 // pred_check
      %p64 = pneg %p63
    $region27: #{tpu_custom_call.1} parent=1 // pred_check_branch
      %66 = sbr.rel (%p64) target = $region29
    $region28: #{tpu_custom_call.1} parent=1 // pred_region
      %vm67 = vcmask 257024
      %68 = vst.msk [vmem:[#allocation2] sm:$0xf] %vm67, 0.0
    $region29: #{tpu_custom_call.1} parent=1 // pred_fallthru
      _
    %v69 = vld [vmem:[#allocation6] sm:$0xff]
    %v70 = vld [vmem:[#allocation6 + $0x8] sm:$0xff]
    %v71 = vld [vmem:[#allocation6 + $0x10] sm:$0xff]
    %v72 = vld [vmem:[#allocation6 + $0x18] sm:$0xff]
    %s73 = scalar_lea.vmem [#allocation6], 32
    %v74 = vld [vmem:[%s73] sm:$0xff]
    %v75 = vld [vmem:[%s73 + $0x8] sm:$0xff]
    %v76 = vld [vmem:[%s73 + $0x10] sm:$0xff]
    %v77 = vld [vmem:[%s73 + $0x18] sm:$0xff]
    %v78 = vld [vmem:[#allocation8] sm:$0xf]
    %v79 = vld [vmem:[#allocation2] sm:$0xf]
    %vm80 = vcmask 261120
    %v82 = vsel %vm80, %v79, 0
    %84 = vmatpush.msra.mxu0 0.0
    %85 = vmatpush.msra.mxu0 0.0
    %86 = vmatpush.msra.mxu0 0.0
    %87 = vmatpush.msra.mxu0 0.0
    %88 = vmatpush.msra.mxu0 0.0
    %89 = vmatpush.msra.mxu0 0.0
    %90 = vmatpush.msra.mxu0 0.0
    %91 = vmatpush.msra.mxu0 0.0
    %92 = vmatpush.msra.mxu0 0.0
    %93 = vmatpush.msra.mxu0 0.0
    %94 = vmatpush.msra.mxu0 0.0
    %95 = vmatpush.msra.mxu0 0.0
    %96 = vmatpush.msra.mxu0 %v72
    %97 = vmatpush.msra.mxu0 %v71
    %98 = vmatpush.msra.mxu0 %v70
    %99 = vmatpush.msra.mxu0 %v69
    %100 = vmatmul.f32.gmra.mxu0 %v82
    %v101 = vpop.f32.mrf.mxu0
    %v102 = vadd.f32 0.0, %v101
    %103 = vdwg.mxu0
    %v104 = vrot.slane %v79, 2
    %v105 = vsel %vm80, %v104, 0
    %107 = vmatpush.msra.mxu0 0.0
    %108 = vmatpush.msra.mxu0 0.0
    %109 = vmatpush.msra.mxu0 0.0
    %110 = vmatpush.msra.mxu0 0.0
    %111 = vmatpush.msra.mxu0 0.0
    %112 = vmatpush.msra.mxu0 0.0
    %113 = vmatpush.msra.mxu0 0.0
    %114 = vmatpush.msra.mxu0 0.0
    %115 = vmatpush.msra.mxu0 0.0
    %116 = vmatpush.msra.mxu0 0.0
    %117 = vmatpush.msra.mxu0 0.0
    %118 = vmatpush.msra.mxu0 0.0
    %119 = vmatpush.msra.mxu0 %v77
    %120 = vmatpush.msra.mxu0 %v76
    %121 = vmatpush.msra.mxu0 %v75
    %122 = vmatpush.msra.mxu0 %v74
    %123 = vmatmul.f32.gmra.mxu0 %v105
    %v124 = vpop.f32.mrf.mxu0
    %v125 = vadd.f32 0.0, %v124
    %126 = vdwg.mxu0
    %v128 = vrot.slane %v125, 6
    %vm130 = vcmask 1041408
    %v131 = vsel %vm130, %v102, %v128
    %v132 = vld [vmem:[#allocation3] sm:$0xf]
    %v133 = vadd.f32 %v132, %v131
    %v134 = vmul.f32 %v133, 0.5
    %v135 = vtanh.pop %v134
    %v136 = vadd.f32 %v135, 1.0
    %v137 = vmul.f32 %v136, 0.5
    %139 = vrot.lane.b32.xlu0 %v78, 64
    %v140 = vpop.permute.xlu0 %139
    %v142 = vadd.f32 %v131, %v140
    %144 = vrot.lane.b32.xlu0 %v142, 64
    %v145 = vpop.permute.xlu0 %144
    %v147 = vmul.f32 %v137, %v145
    %149 = vrot.lane.b32.xlu0 %v147, 64
    %v150 = vpop.permute.xlu0 %149
    %v152 = vadd.f32 %v132, %v150
    %v153 = vtanh.pop %v152
    %155 = vrot.lane.b32.xlu0 %v153, 64
    %v156 = vpop.permute.xlu0 %155
    %v158 = vsub.f32 %v79, %v156
    %160 = vrot.lane.b32.xlu0 %v158, 32
    %v161 = vpop.permute.xlu0 %160
    %v163 = vmul.f32 %v137, %v161
    %165 = vrot.lane.b32.xlu0 %v163, 32
    %v166 = vpop.permute.xlu0 %165
    %v168 = vadd.f32 %v153, %v166
    %170 = vrot.lane.b32.xlu0 %v168, 64
    %v171 = vpop.permute.xlu0 %170
    %vm173 = vcmask 257024
    %174 = vst.msk [vmem:[#allocation9] sm:$0xf] %vm173, %v171
    %v175 = vsel %vm80, %v171, 0
    %177 = vmatpush.msra.mxu0 0.0
    %178 = vmatpush.msra.mxu0 0.0
    %179 = vmatpush.msra.mxu0 0.0
    %180 = vmatpush.msra.mxu0 0.0
    %181 = vmatpush.msra.mxu0 0.0
    %182 = vmatpush.msra.mxu0 0.0
    %183 = vmatpush.msra.mxu0 0.0
    %184 = vmatpush.msra.mxu0 0.0
    %185 = vmatpush.msra.mxu0 0.0
    %186 = vmatpush.msra.mxu0 0.0
    %187 = vmatpush.msra.mxu0 0.0
    %188 = vmatpush.msra.mxu0 0.0
    %189 = vmatpush.msra.mxu0 %v72
    %190 = vmatpush.msra.mxu0 %v71
    %191 = vmatpush.msra.mxu0 %v70
    %192 = vmatpush.msra.mxu0 %v69
    %193 = vmatmul.f32.gmra.mxu0 %v175
    %v194 = vpop.f32.mrf.mxu0
    %v195 = vadd.f32 0.0, %v194
    %196 = vdwg.mxu0
    %v197 = vrot.slane %v168, 2
    %198 = vrot.lane.b32.xlu0 %v197, 64
    %v199 = vpop.permute.xlu0 %198
    %v200 = vsel %vm80, %v199, 0
    %202 = vmatpush.msra.mxu0 0.0
    %203 = vmatpush.msra.mxu0 0.0
    %204 = vmatpush.msra.mxu0 0.0
    %205 = vmatpush.msra.mxu0 0.0
    %206 = vmatpush.msra.mxu0 0.0
    %207 = vmatpush.msra.mxu0 0.0
    %208 = vmatpush.msra.mxu0 0.0
    %209 = vmatpush.msra.mxu0 0.0
    %210 = vmatpush.msra.mxu0 0.0
    %211 = vmatpush.msra.mxu0 0.0
    %212 = vmatpush.msra.mxu0 0.0
    %213 = vmatpush.msra.mxu0 0.0
    %214 = vmatpush.msra.mxu0 %v77
    %215 = vmatpush.msra.mxu0 %v76
    %216 = vmatpush.msra.mxu0 %v75
    %217 = vmatpush.msra.mxu0 %v74
    %218 = vmatmul.f32.gmra.mxu0 %v200
    %v219 = vpop.f32.mrf.mxu0
    %v220 = vadd.f32 0.0, %v219
    %221 = vdwg.mxu0
    %v223 = vrot.slane %v220, 6
    %v225 = vsel %vm130, %v195, %v223
    %s226 = scalar_lea.vmem [#allocation3], 4
    %v227 = vld [vmem:[%s226] sm:$0xf]
    %v228 = vadd.f32 %v227, %v225
    %v229 = vmul.f32 %v228, 0.5
    %v230 = vtanh.pop %v229
    %v231 = vadd.f32 %v230, 1.0
    %v232 = vmul.f32 %v231, 0.5
    %v233 = vadd.f32 %v225, %v140
    %235 = vrot.lane.b32.xlu0 %v233, 64
    %v236 = vpop.permute.xlu0 %235
    %v238 = vmul.f32 %v232, %v236
    %240 = vrot.lane.b32.xlu0 %v238, 64
    %v241 = vpop.permute.xlu0 %240
    %v243 = vadd.f32 %v227, %v241
    %v244 = vtanh.pop %v243
    %v245 = vsub.f32 %v168, %v244
    %247 = vrot.lane.b32.xlu0 %v245, 96
    %v248 = vpop.permute.xlu0 %247
    %v250 = vmul.f32 %v232, %v248
    %252 = vrot.lane.b32.xlu0 %v250, 32
    %v253 = vpop.permute.xlu0 %252
    %v255 = vadd.f32 %v244, %v253
    %257 = vrot.lane.b32.xlu0 %v255, 64
    %v258 = vpop.permute.xlu0 %257
    %s260 = scalar_lea.vmem [#allocation9], 4
    %261 = vst.msk [vmem:[%s260] sm:$0xf] %vm173, %v258
    %v262 = vsel %vm80, %v258, 0
    %264 = vmatpush.msra.mxu0 0.0
    %265 = vmatpush.msra.mxu0 0.0
    %266 = vmatpush.msra.mxu0 0.0
    %267 = vmatpush.msra.mxu0 0.0
    %268 = vmatpush.msra.mxu0 0.0
    %269 = vmatpush.msra.mxu0 0.0
    %270 = vmatpush.msra.mxu0 0.0
    %271 = vmatpush.msra.mxu0 0.0
    %272 = vmatpush.msra.mxu0 0.0
    %273 = vmatpush.msra.mxu0 0.0
    %274 = vmatpush.msra.mxu0 0.0
    %275 = vmatpush.msra.mxu0 0.0
    %276 = vmatpush.msra.mxu0 %v72
    %277 = vmatpush.msra.mxu0 %v71
    %278 = vmatpush.msra.mxu0 %v70
    %279 = vmatpush.msra.mxu0 %v69
    %280 = vmatmul.f32.gmra.mxu0 %v262
    %v281 = vpop.f32.mrf.mxu0
    %v282 = vadd.f32 0.0, %v281
    %283 = vdwg.mxu0
    %v284 = vrot.slane %v255, 2
    %285 = vrot.lane.b32.xlu0 %v284, 64
    %v286 = vpop.permute.xlu0 %285
    %v287 = vsel %vm80, %v286, 0
    %289 = vmatpush.msra.mxu0 0.0
    %290 = vmatpush.msra.mxu0 0.0
    %291 = vmatpush.msra.mxu0 0.0
    %292 = vmatpush.msra.mxu0 0.0
    %293 = vmatpush.msra.mxu0 0.0
    %294 = vmatpush.msra.mxu0 0.0
    %295 = vmatpush.msra.mxu0 0.0
    %296 = vmatpush.msra.mxu0 0.0
    %297 = vmatpush.msra.mxu0 0.0
    %298 = vmatpush.msra.mxu0 0.0
    %299 = vmatpush.msra.mxu0 0.0
    %300 = vmatpush.msra.mxu0 0.0
    %301 = vmatpush.msra.mxu0 %v77
    %302 = vmatpush.msra.mxu0 %v76
    %303 = vmatpush.msra.mxu0 %v75
    %304 = vmatpush.msra.mxu0 %v74
    %305 = vmatmul.f32.gmra.mxu0 %v287
    %v306 = vpop.f32.mrf.mxu0
    %v307 = vadd.f32 0.0, %v306
    %308 = vdwg.mxu0
    %v310 = vrot.slane %v307, 6
    %v312 = vsel %vm130, %v282, %v310
    %s313 = scalar_lea.vmem [#allocation3], 8
    %v314 = vld [vmem:[%s313] sm:$0xf]
    %v315 = vadd.f32 %v314, %v312
    %v316 = vmul.f32 %v315, 0.5
    %v317 = vtanh.pop %v316
    %v318 = vadd.f32 %v317, 1.0
    %v319 = vmul.f32 %v318, 0.5
    %v320 = vadd.f32 %v312, %v140
    %322 = vrot.lane.b32.xlu0 %v320, 64
    %v323 = vpop.permute.xlu0 %322
    %v325 = vmul.f32 %v319, %v323
    %327 = vrot.lane.b32.xlu0 %v325, 64
    %v328 = vpop.permute.xlu0 %327
    %v330 = vadd.f32 %v314, %v328
    %v331 = vtanh.pop %v330
    %v332 = vsub.f32 %v255, %v331
    %334 = vrot.lane.b32.xlu0 %v332, 96
    %v335 = vpop.permute.xlu0 %334
    %v337 = vmul.f32 %v319, %v335
    %339 = vrot.lane.b32.xlu0 %v337, 32
    %v340 = vpop.permute.xlu0 %339
    %v342 = vadd.f32 %v331, %v340
    %344 = vrot.lane.b32.xlu0 %v342, 64
    %v345 = vpop.permute.xlu0 %344
    %s347 = scalar_lea.vmem [#allocation9], 8
    %348 = vst.msk [vmem:[%s347] sm:$0xf] %vm173, %v345
    %v349 = vsel %vm80, %v345, 0
    %351 = vmatpush.msra.mxu0 0.0
    %352 = vmatpush.msra.mxu0 0.0
    %353 = vmatpush.msra.mxu0 0.0
    %354 = vmatpush.msra.mxu0 0.0
    %355 = vmatpush.msra.mxu0 0.0
    %356 = vmatpush.msra.mxu0 0.0
    %357 = vmatpush.msra.mxu0 0.0
    %358 = vmatpush.msra.mxu0 0.0
    %359 = vmatpush.msra.mxu0 0.0
    %360 = vmatpush.msra.mxu0 0.0
    %361 = vmatpush.msra.mxu0 0.0
    %362 = vmatpush.msra.mxu0 0.0
    %363 = vmatpush.msra.mxu0 %v72
    %364 = vmatpush.msra.mxu0 %v71
    %365 = vmatpush.msra.mxu0 %v70
    %366 = vmatpush.msra.mxu0 %v69
    %367 = vmatmul.f32.gmra.mxu0 %v349
    %v368 = vpop.f32.mrf.mxu0
    %v369 = vadd.f32 0.0, %v368
    %370 = vdwg.mxu0
    %v371 = vrot.slane %v342, 2
    %372 = vrot.lane.b32.xlu0 %v371, 64
    %v373 = vpop.permute.xlu0 %372
    %v374 = vsel %vm80, %v373, 0
    %376 = vmatpush.msra.mxu0 0.0
    %377 = vmatpush.msra.mxu0 0.0
    %378 = vmatpush.msra.mxu0 0.0
    %379 = vmatpush.msra.mxu0 0.0
    %380 = vmatpush.msra.mxu0 0.0
    %381 = vmatpush.msra.mxu0 0.0
    %382 = vmatpush.msra.mxu0 0.0
    %383 = vmatpush.msra.mxu0 0.0
    %384 = vmatpush.msra.mxu0 0.0
    %385 = vmatpush.msra.mxu0 0.0
    %386 = vmatpush.msra.mxu0 0.0
    %387 = vmatpush.msra.mxu0 0.0
    %388 = vmatpush.msra.mxu0 %v77
    %389 = vmatpush.msra.mxu0 %v76
    %390 = vmatpush.msra.mxu0 %v75
    %391 = vmatpush.msra.mxu0 %v74
    %392 = vmatmul.f32.gmra.mxu0 %v374
    %v393 = vpop.f32.mrf.mxu0
    %v394 = vadd.f32 0.0, %v393
    %395 = vdwg.mxu0
    %v397 = vrot.slane %v394, 6
    %v399 = vsel %vm130, %v369, %v397
    %s400 = scalar_lea.vmem [#allocation3], 12
    %v401 = vld [vmem:[%s400] sm:$0xf]
    %v402 = vadd.f32 %v401, %v399
    %v403 = vmul.f32 %v402, 0.5
    %v404 = vtanh.pop %v403
    %v405 = vadd.f32 %v404, 1.0
    %v406 = vmul.f32 %v405, 0.5
    %v407 = vadd.f32 %v399, %v140
    %409 = vrot.lane.b32.xlu0 %v407, 64
    %v410 = vpop.permute.xlu0 %409
    %v412 = vmul.f32 %v406, %v410
    %414 = vrot.lane.b32.xlu0 %v412, 64
    %v415 = vpop.permute.xlu0 %414
    %v417 = vadd.f32 %v401, %v415
    %v418 = vtanh.pop %v417
    %v419 = vsub.f32 %v342, %v418
    %421 = vrot.lane.b32.xlu0 %v419, 96
    %v422 = vpop.permute.xlu0 %421
    %v424 = vmul.f32 %v406, %v422
    %426 = vrot.lane.b32.xlu0 %v424, 32
    %v427 = vpop.permute.xlu0 %426
    %v429 = vadd.f32 %v418, %v427
    %431 = vrot.lane.b32.xlu0 %v429, 64
    %v432 = vpop.permute.xlu0 %431
    %s434 = scalar_lea.vmem [#allocation9], 12
    %435 = vst.msk [vmem:[%s434] sm:$0xf] %vm173, %v432
    %v436 = vsel %vm80, %v432, 0
    %438 = vmatpush.msra.mxu0 0.0
    %439 = vmatpush.msra.mxu0 0.0
    %440 = vmatpush.msra.mxu0 0.0
    %441 = vmatpush.msra.mxu0 0.0
    %442 = vmatpush.msra.mxu0 0.0
    %443 = vmatpush.msra.mxu0 0.0
    %444 = vmatpush.msra.mxu0 0.0
    %445 = vmatpush.msra.mxu0 0.0
    %446 = vmatpush.msra.mxu0 0.0
    %447 = vmatpush.msra.mxu0 0.0
    %448 = vmatpush.msra.mxu0 0.0
    %449 = vmatpush.msra.mxu0 0.0
    %450 = vmatpush.msra.mxu0 %v72
    %451 = vmatpush.msra.mxu0 %v71
    %452 = vmatpush.msra.mxu0 %v70
    %453 = vmatpush.msra.mxu0 %v69
    %454 = vmatmul.f32.gmra.mxu0 %v436
    %v455 = vpop.f32.mrf.mxu0
    %v456 = vadd.f32 0.0, %v455
    %457 = vdwg.mxu0
    %v458 = vrot.slane %v429, 2
    %459 = vrot.lane.b32.xlu0 %v458, 64
    %v460 = vpop.permute.xlu0 %459
    %v461 = vsel %vm80, %v460, 0
    %463 = vmatpush.msra.mxu0 0.0
    %464 = vmatpush.msra.mxu0 0.0
    %465 = vmatpush.msra.mxu0 0.0
    %466 = vmatpush.msra.mxu0 0.0
    %467 = vmatpush.msra.mxu0 0.0
    %468 = vmatpush.msra.mxu0 0.0
    %469 = vmatpush.msra.mxu0 0.0
    %470 = vmatpush.msra.mxu0 0.0
    %471 = vmatpush.msra.mxu0 0.0
    %472 = vmatpush.msra.mxu0 0.0
    %473 = vmatpush.msra.mxu0 0.0
    %474 = vmatpush.msra.mxu0 0.0
    %475 = vmatpush.msra.mxu0 %v77
    %476 = vmatpush.msra.mxu0 %v76
    %477 = vmatpush.msra.mxu0 %v75
    %478 = vmatpush.msra.mxu0 %v74
    %479 = vmatmul.f32.gmra.mxu0 %v461
    %v480 = vpop.f32.mrf.mxu0
    %v481 = vadd.f32 0.0, %v480
    %482 = vdwg.mxu0
    %v484 = vrot.slane %v481, 6
    %v486 = vsel %vm130, %v456, %v484
    %s487 = scalar_lea.vmem [#allocation3], 16
    %v488 = vld [vmem:[%s487] sm:$0xf]
    %v489 = vadd.f32 %v488, %v486
    %v490 = vmul.f32 %v489, 0.5
    %v491 = vtanh.pop %v490
    %v492 = vadd.f32 %v491, 1.0
    %v493 = vmul.f32 %v492, 0.5
    %v494 = vadd.f32 %v486, %v140
    %496 = vrot.lane.b32.xlu0 %v494, 64
    %v497 = vpop.permute.xlu0 %496
    %v499 = vmul.f32 %v493, %v497
    %501 = vrot.lane.b32.xlu0 %v499, 64
    %v502 = vpop.permute.xlu0 %501
    %v504 = vadd.f32 %v488, %v502
    %v505 = vtanh.pop %v504
    %v506 = vsub.f32 %v429, %v505
    %508 = vrot.lane.b32.xlu0 %v506, 96
    %v509 = vpop.permute.xlu0 %508
    %v511 = vmul.f32 %v493, %v509
    %513 = vrot.lane.b32.xlu0 %v511, 32
    %v514 = vpop.permute.xlu0 %513
    %v516 = vadd.f32 %v505, %v514
    %518 = vrot.lane.b32.xlu0 %v516, 64
    %v519 = vpop.permute.xlu0 %518
    %s521 = scalar_lea.vmem [#allocation9], 16
    %522 = vst.msk [vmem:[%s521] sm:$0xf] %vm173, %v519
    %v523 = vsel %vm80, %v519, 0
    %525 = vmatpush.msra.mxu0 0.0
    %526 = vmatpush.msra.mxu0 0.0
    %527 = vmatpush.msra.mxu0 0.0
    %528 = vmatpush.msra.mxu0 0.0
    %529 = vmatpush.msra.mxu0 0.0
    %530 = vmatpush.msra.mxu0 0.0
    %531 = vmatpush.msra.mxu0 0.0
    %532 = vmatpush.msra.mxu0 0.0
    %533 = vmatpush.msra.mxu0 0.0
    %534 = vmatpush.msra.mxu0 0.0
    %535 = vmatpush.msra.mxu0 0.0
    %536 = vmatpush.msra.mxu0 0.0
    %537 = vmatpush.msra.mxu0 %v72
    %538 = vmatpush.msra.mxu0 %v71
    %539 = vmatpush.msra.mxu0 %v70
    %540 = vmatpush.msra.mxu0 %v69
    %541 = vmatmul.f32.gmra.mxu0 %v523
    %v542 = vpop.f32.mrf.mxu0
    %v543 = vadd.f32 0.0, %v542
    %544 = vdwg.mxu0
    %v545 = vrot.slane %v516, 2
    %546 = vrot.lane.b32.xlu0 %v545, 64
    %v547 = vpop.permute.xlu0 %546
    %v548 = vsel %vm80, %v547, 0
    %550 = vmatpush.msra.mxu0 0.0
    %551 = vmatpush.msra.mxu0 0.0
    %552 = vmatpush.msra.mxu0 0.0
    %553 = vmatpush.msra.mxu0 0.0
    %554 = vmatpush.msra.mxu0 0.0
    %555 = vmatpush.msra.mxu0 0.0
    %556 = vmatpush.msra.mxu0 0.0
    %557 = vmatpush.msra.mxu0 0.0
    %558 = vmatpush.msra.mxu0 0.0
    %559 = vmatpush.msra.mxu0 0.0
    %560 = vmatpush.msra.mxu0 0.0
    %561 = vmatpush.msra.mxu0 0.0
    %562 = vmatpush.msra.mxu0 %v77
    %563 = vmatpush.msra.mxu0 %v76
    %564 = vmatpush.msra.mxu0 %v75
    %565 = vmatpush.msra.mxu0 %v74
    %566 = vmatmul.f32.gmra.mxu0 %v548
    %v567 = vpop.f32.mrf.mxu0
    %v568 = vadd.f32 0.0, %v567
    %569 = vdwg.mxu0
    %v571 = vrot.slane %v568, 6
    %v573 = vsel %vm130, %v543, %v571
    %s574 = scalar_lea.vmem [#allocation3], 20
    %v575 = vld [vmem:[%s574] sm:$0xf]
    %v576 = vadd.f32 %v575, %v573
    %v577 = vmul.f32 %v576, 0.5
    %v578 = vtanh.pop %v577
    %v579 = vadd.f32 %v578, 1.0
    %v580 = vmul.f32 %v579, 0.5
    %v581 = vadd.f32 %v573, %v140
    %583 = vrot.lane.b32.xlu0 %v581, 64
    %v584 = vpop.permute.xlu0 %583
    %v586 = vmul.f32 %v580, %v584
    %588 = vrot.lane.b32.xlu0 %v586, 64
    %v589 = vpop.permute.xlu0 %588
    %v591 = vadd.f32 %v575, %v589
    %v592 = vtanh.pop %v591
    %v593 = vsub.f32 %v516, %v592
    %595 = vrot.lane.b32.xlu0 %v593, 96
    %v596 = vpop.permute.xlu0 %595
    %v598 = vmul.f32 %v580, %v596
    %600 = vrot.lane.b32.xlu0 %v598, 32
    %v601 = vpop.permute.xlu0 %600
    %v603 = vadd.f32 %v592, %v601
    %605 = vrot.lane.b32.xlu0 %v603, 64
    %v606 = vpop.permute.xlu0 %605
    %s608 = scalar_lea.vmem [#allocation9], 20
    %609 = vst.msk [vmem:[%s608] sm:$0xf] %vm173, %v606
    %v610 = vsel %vm80, %v606, 0
    %612 = vmatpush.msra.mxu0 0.0
    %613 = vmatpush.msra.mxu0 0.0
    %614 = vmatpush.msra.mxu0 0.0
    %615 = vmatpush.msra.mxu0 0.0
    %616 = vmatpush.msra.mxu0 0.0
    %617 = vmatpush.msra.mxu0 0.0
    %618 = vmatpush.msra.mxu0 0.0
    %619 = vmatpush.msra.mxu0 0.0
    %620 = vmatpush.msra.mxu0 0.0
    %621 = vmatpush.msra.mxu0 0.0
    %622 = vmatpush.msra.mxu0 0.0
    %623 = vmatpush.msra.mxu0 0.0
    %624 = vmatpush.msra.mxu0 %v72
    %625 = vmatpush.msra.mxu0 %v71
    %626 = vmatpush.msra.mxu0 %v70
    %627 = vmatpush.msra.mxu0 %v69
    %628 = vmatmul.f32.gmra.mxu0 %v610
    %v629 = vpop.f32.mrf.mxu0
    %v630 = vadd.f32 0.0, %v629
    %631 = vdwg.mxu0
    %v632 = vrot.slane %v603, 2
    %633 = vrot.lane.b32.xlu0 %v632, 64
    %v634 = vpop.permute.xlu0 %633
    %v635 = vsel %vm80, %v634, 0
    %637 = vmatpush.msra.mxu0 0.0
    %638 = vmatpush.msra.mxu0 0.0
    %639 = vmatpush.msra.mxu0 0.0
    %640 = vmatpush.msra.mxu0 0.0
    %641 = vmatpush.msra.mxu0 0.0
    %642 = vmatpush.msra.mxu0 0.0
    %643 = vmatpush.msra.mxu0 0.0
    %644 = vmatpush.msra.mxu0 0.0
    %645 = vmatpush.msra.mxu0 0.0
    %646 = vmatpush.msra.mxu0 0.0
    %647 = vmatpush.msra.mxu0 0.0
    %648 = vmatpush.msra.mxu0 0.0
    %649 = vmatpush.msra.mxu0 %v77
    %650 = vmatpush.msra.mxu0 %v76
    %651 = vmatpush.msra.mxu0 %v75
    %652 = vmatpush.msra.mxu0 %v74
    %653 = vmatmul.f32.gmra.mxu0 %v635
    %v654 = vpop.f32.mrf.mxu0
    %v655 = vadd.f32 0.0, %v654
    %656 = vdwg.mxu0
    %v658 = vrot.slane %v655, 6
    %v660 = vsel %vm130, %v630, %v658
    %s661 = scalar_lea.vmem [#allocation3], 24
    %v662 = vld [vmem:[%s661] sm:$0xf]
    %v663 = vadd.f32 %v662, %v660
    %v664 = vmul.f32 %v663, 0.5
    %v665 = vtanh.pop %v664
    %v666 = vadd.f32 %v665, 1.0
    %v667 = vmul.f32 %v666, 0.5
    %v668 = vadd.f32 %v660, %v140
    %670 = vrot.lane.b32.xlu0 %v668, 64
    %v671 = vpop.permute.xlu0 %670
    %v673 = vmul.f32 %v667, %v671
    %675 = vrot.lane.b32.xlu0 %v673, 64
    %v676 = vpop.permute.xlu0 %675
    %v678 = vadd.f32 %v662, %v676
    %v679 = vtanh.pop %v678
    %v680 = vsub.f32 %v603, %v679
    %682 = vrot.lane.b32.xlu0 %v680, 96
    %v683 = vpop.permute.xlu0 %682
    %v685 = vmul.f32 %v667, %v683
    %687 = vrot.lane.b32.xlu0 %v685, 32
    %v688 = vpop.permute.xlu0 %687
    %v690 = vadd.f32 %v679, %v688
    %692 = vrot.lane.b32.xlu0 %v690, 64
    %v693 = vpop.permute.xlu0 %692
    %s695 = scalar_lea.vmem [#allocation9], 24
    %696 = vst.msk [vmem:[%s695] sm:$0xf] %vm173, %v693
    %v697 = vsel %vm80, %v693, 0
    %699 = vmatpush.msra.mxu0 0.0
    %700 = vmatpush.msra.mxu0 0.0
    %701 = vmatpush.msra.mxu0 0.0
    %702 = vmatpush.msra.mxu0 0.0
    %703 = vmatpush.msra.mxu0 0.0
    %704 = vmatpush.msra.mxu0 0.0
    %705 = vmatpush.msra.mxu0 0.0
    %706 = vmatpush.msra.mxu0 0.0
    %707 = vmatpush.msra.mxu0 0.0
    %708 = vmatpush.msra.mxu0 0.0
    %709 = vmatpush.msra.mxu0 0.0
    %710 = vmatpush.msra.mxu0 0.0
    %711 = vmatpush.msra.mxu0 %v72
    %712 = vmatpush.msra.mxu0 %v71
    %713 = vmatpush.msra.mxu0 %v70
    %714 = vmatpush.msra.mxu0 %v69
    %715 = vmatmul.f32.gmra.mxu0 %v697
    %v716 = vpop.f32.mrf.mxu0
    %v717 = vadd.f32 0.0, %v716
    %718 = vdwg.mxu0
    %v719 = vrot.slane %v690, 2
    %720 = vrot.lane.b32.xlu0 %v719, 64
    %v721 = vpop.permute.xlu0 %720
    %v722 = vsel %vm80, %v721, 0
    %724 = vmatpush.msra.mxu0 0.0
    %725 = vmatpush.msra.mxu0 0.0
    %726 = vmatpush.msra.mxu0 0.0
    %727 = vmatpush.msra.mxu0 0.0
    %728 = vmatpush.msra.mxu0 0.0
    %729 = vmatpush.msra.mxu0 0.0
    %730 = vmatpush.msra.mxu0 0.0
    %731 = vmatpush.msra.mxu0 0.0
    %732 = vmatpush.msra.mxu0 0.0
    %733 = vmatpush.msra.mxu0 0.0
    %734 = vmatpush.msra.mxu0 0.0
    %735 = vmatpush.msra.mxu0 0.0
    %736 = vmatpush.msra.mxu0 %v77
    %737 = vmatpush.msra.mxu0 %v76
    %738 = vmatpush.msra.mxu0 %v75
    %739 = vmatpush.msra.mxu0 %v74
    %740 = vmatmul.f32.gmra.mxu0 %v722
    %v741 = vpop.f32.mrf.mxu0
    %v742 = vadd.f32 0.0, %v741
    %743 = vdwg.mxu0
    %v745 = vrot.slane %v742, 6
    %v747 = vsel %vm130, %v717, %v745
    %s748 = scalar_lea.vmem [#allocation3], 28
    %v749 = vld [vmem:[%s748] sm:$0xf]
    %v750 = vadd.f32 %v749, %v747
    %v751 = vmul.f32 %v750, 0.5
    %v752 = vtanh.pop %v751
    %v753 = vadd.f32 %v752, 1.0
    %v754 = vmul.f32 %v753, 0.5
    %v755 = vadd.f32 %v747, %v140
    %757 = vrot.lane.b32.xlu0 %v755, 64
    %v758 = vpop.permute.xlu0 %757
    %v760 = vmul.f32 %v754, %v758
    %762 = vrot.lane.b32.xlu0 %v760, 64
    %v763 = vpop.permute.xlu0 %762
    %v765 = vadd.f32 %v749, %v763
    %v766 = vtanh.pop %v765
    %v767 = vsub.f32 %v690, %v766
    %769 = vrot.lane.b32.xlu0 %v767, 96
    %v770 = vpop.permute.xlu0 %769
    %v772 = vmul.f32 %v754, %v770
    %774 = vrot.lane.b32.xlu0 %v772, 32
    %v775 = vpop.permute.xlu0 %774
    %v777 = vadd.f32 %v766, %v775
    %779 = vrot.lane.b32.xlu0 %v777, 64
    %v780 = vpop.permute.xlu0 %779
    %s782 = scalar_lea.vmem [#allocation9], 28
    %783 = vst.msk [vmem:[%s782] sm:$0xf] %vm173, %v780
    %784 = vst.msk [vmem:[#allocation2] sm:$0xf] %vm173, %v780
    %785 = vst.msk [vmem:[#allocation10] sm:$0xf] %vm173, %v780
    // Predicated region
    $region30: #{tpu_custom_call.1} parent=1 // pred_check
      _
    $region31: #{tpu_custom_call.1} parent=1 // pred_check_branch
      %787 = sbr.rel (0) target = $region33
    $region32: #{tpu_custom_call.1} parent=1 // pred_region
      %789 = vsyncadd [#allocation5], 0
      %s790 = sshll.u32 [#allocation9], 4
      %s791 = int_to_ptr.vmem [resolvable:$true] %s790
      %s792 = sshll.u32 %s3, 4
      %s793 = int_to_ptr.hbm [resolvable:$true] %s792
      %798 = dma.vmem_to_hbm [thread:$0]  %s791, 512, %s793, [#allocation5], 64, 64, 4
    $region33: #{tpu_custom_call.1} parent=1 // pred_fallthru
      _
    // Predicated region
    $region34: #{tpu_custom_call.1} parent=1 // pred_check
      _
    $region35: #{tpu_custom_call.1} parent=1 // pred_check_branch
      %800 = sbr.rel (0) target = $region37
    $region36: #{tpu_custom_call.1} parent=1 // pred_region
      %802 = vsyncadd [#allocation11], 0
      %s804 = sshll.u32 [#allocation10], 4
      %s805 = int_to_ptr.vmem [resolvable:$true] %s804
      %s806 = sshll.u32 %s4, 4
      %s807 = int_to_ptr.hbm [resolvable:$true] %s806
      %809 = dma.vmem_to_hbm [thread:$0]  %s805, 64, %s807, [#allocation11]
    $region37: #{tpu_custom_call.1} parent=1 // pred_fallthru
      _
    // Predicated region
    $region38: #{tpu_custom_call.1} parent=1 // pred_check
      _
    $region39: #{tpu_custom_call.1} parent=1 // pred_check_branch
      %811 = sbr.rel (0) target = $region41
    $region40: #{tpu_custom_call.1} parent=1 // pred_region
      %813 = dma.done [#allocation5], 512
    $region41: #{tpu_custom_call.1} parent=1 // pred_fallthru
      _
    // Predicated region
    $region42: #{tpu_custom_call.1} parent=1 // pred_check
      _
    $region43: #{tpu_custom_call.1} parent=1 // pred_check_branch
      %815 = sbr.rel (0) target = $region45
    $region44: #{tpu_custom_call.1} parent=1 // pred_region
      %817 = dma.done [#allocation11], 64
    $region45: #{tpu_custom_call.1} parent=1 // pred_fallthru
      _
    %818 = vsyncpa [#allocation4], 1
    %819 = vsyncpa [#allocation7], 1
    %820 = vsyncpa [#allocation5], 1
    %821 = vsyncpa [#allocation11], 1

</llo_original>
